<compile_context>
chip_gen: v7x
topology: tpu7x:2x2x1
jax: 0.10.0
libtpu: 0.0.40
codegen_flags: <defaults>
</compile_context>

<pallas_src>
import functools

import jax
import jax.numpy as jnp
from jax.experimental import pallas as pl
from jax.experimental.pallas import tpu as pltpu


def _multi_tensorcore() -> bool:
    """True if the attached chip exposes >1 TensorCore per device (v7x, v4/v5p megacore)."""
    try:
        kind = jax.devices()[0].device_kind.lower()
    except Exception:
        return False
    return any(tok in kind for tok in ("v7", "7x", "v4", "v5p"))


def _make_kernel(tb: int):
    """Kernel processing `tb` samples per grid step (tb is small and static)."""

    def kernel(x_ref, p_ref, w_ref, o_ref):
        # x_ref: (tb, C, H*W)   one flattened spatial map per channel per sample
        # p_ref: (H*W, Ho*Wo)   pooling matrix (avg over k x k windows), shared
        # w_ref: (C, C)         Weff = I + conv1x1 weight (residual folded in)
        # o_ref: (tb, C, Ho*Wo)
        p = p_ref[...]
        w = w_ref[...]
        for b in range(tb):  # static unroll, tb <= 8
            xb = x_ref[b]                                        # (C, H*W)
            pooled = jnp.dot(xb, p,
                             preferred_element_type=jnp.float32,
                             precision=jax.lax.Precision.HIGHEST)  # (C, Ho*Wo) f32
            mixed = jnp.dot(w, pooled,
                            preferred_element_type=jnp.float32,
                            precision=jax.lax.Precision.HIGHEST)   # pooled + conv1x1(pooled)
            o_ref[b] = mixed.astype(o_ref.dtype)

    return kernel


@functools.partial(jax.jit, static_argnums=(2,))
def fp_downsamp(x_nchw, weight, k):
    """x_nchw: (N, C, H, W); weight: (C, C) 1x1-conv weight (out_c, in_c); k: pool size."""
    N, C, H, W = x_nchw.shape
    assert H % k == 0 and W % k == 0, "AvgPool2d with stride==kernel expects divisible H, W"
    Ho, Wo = H // k, W // k
    HW, HoWo = H * W, Ho * Wo
    f32 = jnp.float32

    # --- Tiny trace-time factor matrices (replaces the old ~1 MB dense BigW). -----------
    # P[(h, w), (i, j)] = [h//k == i] * [w//k == j] / k^2 ; built from iotas only, so XLA
    # constant-folds it at compile time (no per-call HBM pass over a large weight).
    ph = jnp.arange(H)[:, None] // k == jnp.arange(Ho)[None, :]          # (H, Ho)
    pw = jnp.arange(W)[:, None] // k == jnp.arange(Wo)[None, :]          # (W, Wo)
    pool_mat = (ph[:, None, :, None] & pw[None, :, None, :]).astype(f32)
    pool_mat = (pool_mat / (k * k)).reshape(HW, HoWo).astype(x_nchw.dtype)
    weff = (jnp.eye(C, dtype=f32) + weight.astype(f32)).astype(x_nchw.dtype)  # I + W

    # --- Free reshape only (no transposes). ----------------------------------------------
    x_flat = x_nchw.reshape(N, C, HW)

    # --- Batch tiling: 1 step on single-TC chips, >=2 parallel blocks on multi-TC chips.
    TB = max(1, min(N, 8))
    if _multi_tensorcore() and N >= 2:
        TB = min(TB, pl.cdiv(N, 2))
    num_b = pl.cdiv(N, TB)

    out_flat = pl.pallas_call(
        _make_kernel(TB),
        out_shape=jax.ShapeDtypeStruct((N, C, HoWo), x_nchw.dtype),
        grid_spec=pltpu.PrefetchScalarGridSpec(
            num_scalar_prefetch=0,
            grid=(num_b,),
            in_specs=[
                pl.BlockSpec((TB, C, HW), lambda b: (b, 0, 0)),
                pl.BlockSpec((HW, HoWo), lambda b: (0, 0)),   # constant index -> fetched once
                pl.BlockSpec((C, C), lambda b: (0, 0)),       # constant index -> fetched once
            ],
            out_specs=pl.BlockSpec((TB, C, HoWo), lambda b: (b, 0, 0)),
        ),
        compiler_params=pltpu.CompilerParams(
            dimension_semantics=("parallel",),
            vmem_limit_bytes=32 * 1024 * 1024,   # per-step footprint is << 1 MiB
        ),
    )(x_flat, pool_mat, weff)

    return out_flat.reshape(N, C, Ho, Wo)        # free reshape back to NCHW


def _reference(x_nchw, weight, k):
    # Pure-JAX reference for correctness checking.
    N, C, H, W = x_nchw.shape
    Ho, Wo = H // k, W // k
    pooled = x_nchw.reshape(N, C, Ho, k, Wo, k).mean(axis=(3, 5))     # (N, C, Ho, Wo)
    proj = jnp.einsum("oc,nchw->nohw", weight, pooled,
                      precision=jax.lax.Precision.HIGHEST)
    return pooled + proj


if __name__ == "__main__":
    key = jax.random.PRNGKey(0)
    kx, kw = jax.random.split(key)

    # Module config: dim=4 channels, downpool=0.5 -> AvgPool2d(kernel=2, stride=2)
    N, C, H, W = 2, 4, 16, 16
    downpool = 0.5
    k = int(1 / downpool)

    x = jax.random.normal(kx, (N, C, H, W), dtype=jnp.float32)
    # Deterministic Conv2d(dim, dim, 1, bias=False) weight, shape (out_c, in_c).
    weight = 0.1 * jax.random.normal(kw, (C, C), dtype=jnp.float32)

    out = jax.block_until_ready(fp_downsamp(x, weight, k))

    ref = _reference(x, weight, k)
    assert out.shape == (N, C, H // k, W // k)
    assert jnp.allclose(out, ref, atol=1e-4, rtol=1e-4), "mismatch vs reference"

    print("KERNEL_OK")
</pallas_src>

<mosaic_0001>
module attributes {stable_mosaic.version = 11 : i64} {
  func.func @kernel(%arg0: i32, %arg1: memref<2x4x256xf32, #tpu.memory_space<vmem>>, %arg2: memref<256x64xf32, #tpu.memory_space<vmem>>, %arg3: memref<4x4xf32, #tpu.memory_space<vmem>>, %arg4: memref<2x4x64xf32, #tpu.memory_space<vmem>>) attributes {dimension_semantics = [#tpu.dimension_semantics<parallel>], iteration_bounds = array<i64: 1>, scalar_prefetch = 0 : i64, scratch_operands = 0 : i64, tpu.core_type = #tpu.core_type<tc>, window_params = [{transform_indices = @transform_0, window_bounds = array<i64: 2, 4, 256>}, {pipeline_mode = #tpu.pipeline_mode<synchronous>, transform_indices = @transform_1, window_bounds = array<i64: 256, 64>}, {pipeline_mode = #tpu.pipeline_mode<synchronous>, transform_indices = @transform_2, window_bounds = array<i64: 4, 4>}, {transform_indices = @transform_3, window_bounds = array<i64: 2, 4, 64>}]} {
    %c0 = arith.constant 0 : index
    %c0_0 = arith.constant 0 : index
    %0 = vector.load %arg2[%c0, %c0_0] : memref<256x64xf32, #tpu.memory_space<vmem>>, vector<256x64xf32>
    %c0_1 = arith.constant 0 : index
    %c0_2 = arith.constant 0 : index
    %1 = vector.load %arg3[%c0_1, %c0_2] : memref<4x4xf32, #tpu.memory_space<vmem>>, vector<4x4xf32>
    %c0_3 = arith.constant 0 : index
    %c0_4 = arith.constant 0 : index
    %c0_5 = arith.constant 0 : index
    %2 = vector.load %arg1[%c0_3, %c0_4, %c0_5] : memref<2x4x256xf32, #tpu.memory_space<vmem>>, vector<1x4x256xf32>
    %3 = vector.shape_cast %2 : vector<1x4x256xf32> to vector<4x256xf32>
    %cst = arith.constant dense<0.000000e+00> : vector<4x64xf32>
    %4 = tpu.matmul %3, %0, %cst {dimension_numbers = #tpu.dot_dimension_numbers<[1], [0], [0], [1], [0, 0, 1, 1], [], []>, precision = #tpu.contract_precision<fp32>} : vector<4x256xf32>, vector<256x64xf32>, vector<4x64xf32> -> vector<4x64xf32>
    %cst_6 = arith.constant dense<0.000000e+00> : vector<4x64xf32>
    %5 = tpu.matmul %1, %4, %cst_6 {dimension_numbers = #tpu.dot_dimension_numbers<[1], [0], [0], [1], [0, 0, 1, 1], [], []>, precision = #tpu.contract_precision<fp32>} : vector<4x4xf32>, vector<4x64xf32>, vector<4x64xf32> -> vector<4x64xf32>
    %c0_7 = arith.constant 0 : index
    %c0_8 = arith.constant 0 : index
    %c0_9 = arith.constant 0 : index
    %6 = vector.load %arg4[%c0_7, %c0_8, %c0_9] : memref<2x4x64xf32, #tpu.memory_space<vmem>>, vector<1x4x64xf32>
    %7 = vector.shape_cast %6 : vector<1x4x64xf32> to vector<4x64xf32>
    %8 = vector.shape_cast %5 : vector<4x64xf32> to vector<1x4x64xf32>
    tpu.vector_store %arg4[%c0_7, %c0_8, %c0_9], %8 {strides = array<i32>} : memref<2x4x64xf32, #tpu.memory_space<vmem>>, vector<1x4x64xf32>,
    %c1 = arith.constant 1 : index
    %c0_10 = arith.constant 0 : index
    %c0_11 = arith.constant 0 : index
    %9 = vector.load %arg1[%c1, %c0_10, %c0_11] : memref<2x4x256xf32, #tpu.memory_space<vmem>>, vector<1x4x256xf32>
    %10 = vector.shape_cast %9 : vector<1x4x256xf32> to vector<4x256xf32>
    %cst_12 = arith.constant dense<0.000000e+00> : vector<4x64xf32>
    %11 = tpu.matmul %10, %0, %cst_12 {dimension_numbers = #tpu.dot_dimension_numbers<[1], [0], [0], [1], [0, 0, 1, 1], [], []>, precision = #tpu.contract_precision<fp32>} : vector<4x256xf32>, vector<256x64xf32>, vector<4x64xf32> -> vector<4x64xf32>
    %cst_13 = arith.constant dense<0.000000e+00> : vector<4x64xf32>
    %12 = tpu.matmul %1, %11, %cst_13 {dimension_numbers = #tpu.dot_dimension_numbers<[1], [0], [0], [1], [0, 0, 1, 1], [], []>, precision = #tpu.contract_precision<fp32>} : vector<4x4xf32>, vector<4x64xf32>, vector<4x64xf32> -> vector<4x64xf32>
    %c1_14 = arith.constant 1 : index
    %c0_15 = arith.constant 0 : index
    %c0_16 = arith.constant 0 : index
    %13 = vector.load %arg4[%c1_14, %c0_15, %c0_16] : memref<2x4x64xf32, #tpu.memory_space<vmem>>, vector<1x4x64xf32>
    %14 = vector.shape_cast %13 : vector<1x4x64xf32> to vector<4x64xf32>
    %15 = vector.shape_cast %12 : vector<4x64xf32> to vector<1x4x64xf32>
    tpu.vector_store %arg4[%c1_14, %c0_15, %c0_16], %15 {strides = array<i32>} : memref<2x4x64xf32, #tpu.memory_space<vmem>>, vector<1x4x64xf32>,
    return
  }
  func.func @transform_0(%arg0: i32) -> (i32, i32, i32) {
    %c0_i32 = arith.constant 0 : i32
    %c0_i32_0 = arith.constant 0 : i32
    %c0_i32_1 = arith.constant 0 : i32
    return %arg0, %c0_i32, %c0_i32_0 : i32, i32, i32
  }
  func.func @transform_1(%arg0: i32) -> (i32, i32) {
    %c0_i32 = arith.constant 0 : i32
    %c0_i32_0 = arith.constant 0 : i32
    %c0_i32_1 = arith.constant 0 : i32
    return %c0_i32, %c0_i32_0 : i32, i32
  }
  func.func @transform_2(%arg0: i32) -> (i32, i32) {
    %c0_i32 = arith.constant 0 : i32
    %c0_i32_0 = arith.constant 0 : i32
    %c0_i32_1 = arith.constant 0 : i32
    return %c0_i32, %c0_i32_0 : i32, i32
  }
  func.func @transform_3(%arg0: i32) -> (i32, i32, i32) {
    %c0_i32 = arith.constant 0 : i32
    %c0_i32_0 = arith.constant 0 : i32
    %c0_i32_1 = arith.constant 0 : i32
    return %arg0, %c0_i32, %c0_i32_0 : i32, i32, i32
  }
}

</mosaic_0001>

<llo_original>
// kernel: fp_downsamp.1
$region0: #{fp_downsamp.1}
  #allocation0 [shape = 'u32[]', space=smem, size = 0x4, offset = 0x4, fixed_abs, tag = 'smem constant byte address 0x4 - core index']
  #allocation1 [shape = 'u32[144,128]{1,0:T(1,128)}', space=vmem, size = 0x12000, scoped, tag = 'internal scratch']
  %s0 = inlined_call_operand.vmem [shape: f32[2,4,256], index: 0, kind: input, shape index: {}]
  %s1 = inlined_call_operand.vmem [shape: f32[256,64], index: 1, kind: input, shape index: {}]
  %s2 = inlined_call_operand.vmem [shape: f32[4,4], index: 2, kind: input, shape index: {}]
  %s3 = inlined_call_operand.vmem [shape: f32[2,4,64], index: 3, kind: output, shape index: {}]
  %s4 = sld [smem:[#allocation0]]
  $region22: #{fp_downsamp.1} parent=0
    _
  %s6 = ssub.s32 1, %s4
  %s7 = scalar_select 0, %s6, %s4
  // Predicated region
  $region2: #{fp_downsamp.1} parent=0 // pred_check
    _
  $region3: #{fp_downsamp.1} parent=0 // pred_check_branch
    %9 = sbr.rel (0) target = $region5
  $region4: #{fp_downsamp.1} parent=0 // pred_region
    _
  $region5: #{fp_downsamp.1} parent=0 // pred_fallthru
    _
  // Predicated region
  $region6: #{fp_downsamp.1} parent=0 // pred_check
    _
  $region7: #{fp_downsamp.1} parent=0 // pred_check_branch
    %11 = sbr.rel (0) target = $region9
  $region8: #{fp_downsamp.1} parent=0 // pred_region
    _
  $region9: #{fp_downsamp.1} parent=0 // pred_fallthru
    _
  // Predicated region
  $region10: #{fp_downsamp.1} parent=0 // pred_check
    _
  $region11: #{fp_downsamp.1} parent=0 // pred_check_branch
    %13 = sbr.rel (0) target = $region13
  $region12: #{fp_downsamp.1} parent=0 // pred_region
    _
  $region13: #{fp_downsamp.1} parent=0 // pred_fallthru
    _
  %v14 = vld [vmem:[%s1] sm:$0xff]
  %v15 = vld [vmem:[%s1 + $0x8] sm:$0xff]
  %v16 = vld [vmem:[%s1 + $0x10] sm:$0xff]
  %v17 = vld [vmem:[%s1 + $0x18] sm:$0xff]
  %v18 = vld [vmem:[%s1 + $0x20] sm:$0xff]
  %v19 = vld [vmem:[%s1 + $0x28] sm:$0xff]
  %v20 = vld [vmem:[%s1 + $0x30] sm:$0xff]
  %v21 = vld [vmem:[%s1 + $0x38] sm:$0xff]
  %v22 = vld [vmem:[%s1 + $0x40] sm:$0xff]
  %v23 = vld [vmem:[%s1 + $0x48] sm:$0xff]
  %v24 = vld [vmem:[%s1 + $0x50] sm:$0xff]
  %v25 = vld [vmem:[%s1 + $0x58] sm:$0xff]
  %v26 = vld [vmem:[%s1 + $0x60] sm:$0xff]
  %v27 = vld [vmem:[%s1 + $0x68] sm:$0xff]
  %v28 = vld [vmem:[%s1 + $0x70] sm:$0xff]
  %v29 = vld [vmem:[%s1 + $0x78] sm:$0xff]
  %v30 = vld [vmem:[%s1 + $0x80] sm:$0xff]
  %v31 = vld [vmem:[%s1 + $0x88] sm:$0xff]
  %v32 = vld [vmem:[%s1 + $0x90] sm:$0xff]
  %v33 = vld [vmem:[%s1 + $0x98] sm:$0xff]
  %v34 = vld [vmem:[%s1 + $0xa0] sm:$0xff]
  %v35 = vld [vmem:[%s1 + $0xa8] sm:$0xff]
  %v36 = vld [vmem:[%s1 + $0xb0] sm:$0xff]
  %v37 = vld [vmem:[%s1 + $0xb8] sm:$0xff]
  %v38 = vld [vmem:[%s1 + $0xc0] sm:$0xff]
  %v39 = vld [vmem:[%s1 + $0xc8] sm:$0xff]
  %v40 = vld [vmem:[%s1 + $0xd0] sm:$0xff]
  %v41 = vld [vmem:[%s1 + $0xd8] sm:$0xff]
  %v42 = vld [vmem:[%s1 + $0xe0] sm:$0xff]
  %v43 = vld [vmem:[%s1 + $0xe8] sm:$0xff]
  %v44 = vld [vmem:[%s1 + $0xf0] sm:$0xff]
  %v45 = vld [vmem:[%s1 + $0xf8] sm:$0xff]
  %v46 = vld [vmem:[%s2] sm:$0xf]
  %v47 = vld [vmem:[%s0] sm:$0xff]
  %v49 = vcombine.high %v47, %v47
  %51 = vmatprep.subr.mxu0 0.0
  %v52 = vand.u32 %v14, 4294901760
  %53 = vmatpush1.msra.mxu0 %v52
  %54 = vmatprep.subr.mxu0 0.0
  %v55 = vand.u32 %v15, 4294901760
  %56 = vmatpush1.msra.mxu0 %v55
  %57 = vmatprep.subr.mxu0 0.0
  %v58 = vand.u32 %v16, 4294901760
  %59 = vmatpush1.msra.mxu0 %v58
  %60 = vmatprep.subr.mxu0 0.0
  %v61 = vand.u32 %v17, 4294901760
  %62 = vmatpush1.msra.mxu0 %v61
  %63 = vmatprep.subr.mxu0 0.0
  %v64 = vand.u32 %v18, 4294901760
  %65 = vmatpush1.msra.mxu0 %v64
  %66 = vmatprep.subr.mxu0 0.0
  %v67 = vand.u32 %v19, 4294901760
  %68 = vmatpush1.msra.mxu0 %v67
  %69 = vmatprep.subr.mxu0 0.0
  %v70 = vand.u32 %v20, 4294901760
  %71 = vmatpush1.msra.mxu0 %v70
  %72 = vmatprep.subr.mxu0 0.0
  %v73 = vand.u32 %v21, 4294901760
  %74 = vmatpush1.msra.mxu0 %v73
  %75 = vmatprep.subr.mxu0 0.0
  %v76 = vand.u32 %v22, 4294901760
  %77 = vmatpush1.msra.mxu0 %v76
  %78 = vmatprep.subr.mxu0 0.0
  %v79 = vand.u32 %v23, 4294901760
  %80 = vmatpush1.msra.mxu0 %v79
  %81 = vmatprep.subr.mxu0 0.0
  %v82 = vand.u32 %v24, 4294901760
  %83 = vmatpush1.msra.mxu0 %v82
  %84 = vmatprep.subr.mxu0 0.0
  %v85 = vand.u32 %v25, 4294901760
  %86 = vmatpush1.msra.mxu0 %v85
  %87 = vmatprep.subr.mxu0 0.0
  %v88 = vand.u32 %v26, 4294901760
  %89 = vmatpush1.msra.mxu0 %v88
  %90 = vmatprep.subr.mxu0 0.0
  %v91 = vand.u32 %v27, 4294901760
  %92 = vmatpush1.msra.mxu0 %v91
  %93 = vmatprep.subr.mxu0 0.0
  %v94 = vand.u32 %v28, 4294901760
  %95 = vmatpush1.msra.mxu0 %v94
  %96 = vmatprep.subr.mxu0 0.0
  %v97 = vand.u32 %v29, 4294901760
  %98 = vmatpush1.msra.mxu0 %v97
  %99 = vmatprep.subr.mxu0 0.0
  %v100 = vand.u32 %v30, 4294901760
  %101 = vmatpush1.msra.mxu0 %v100
  %102 = vmatprep.subr.mxu0 0.0
  %v103 = vand.u32 %v31, 4294901760
  %104 = vmatpush1.msra.mxu0 %v103
  %105 = vmatprep.subr.mxu0 0.0
  %v106 = vand.u32 %v32, 4294901760
  %107 = vmatpush1.msra.mxu0 %v106
  %108 = vmatprep.subr.mxu0 0.0
  %v109 = vand.u32 %v33, 4294901760
  %110 = vmatpush1.msra.mxu0 %v109
  %111 = vmatprep.subr.mxu0 0.0
  %v112 = vand.u32 %v34, 4294901760
  %113 = vmatpush1.msra.mxu0 %v112
  %114 = vmatprep.subr.mxu0 0.0
  %v115 = vand.u32 %v35, 4294901760
  %116 = vmatpush1.msra.mxu0 %v115
  %117 = vmatprep.subr.mxu0 0.0
  %v118 = vand.u32 %v36, 4294901760
  %119 = vmatpush1.msra.mxu0 %v118
  %120 = vmatprep.subr.mxu0 0.0
  %v121 = vand.u32 %v37, 4294901760
  %122 = vmatpush1.msra.mxu0 %v121
  %123 = vmatprep.subr.mxu0 0.0
  %v124 = vand.u32 %v38, 4294901760
  %125 = vmatpush1.msra.mxu0 %v124
  %126 = vmatprep.subr.mxu0 0.0
  %v127 = vand.u32 %v39, 4294901760
  %128 = vmatpush1.msra.mxu0 %v127
  %129 = vmatprep.subr.mxu0 0.0
  %v130 = vand.u32 %v40, 4294901760
  %131 = vmatpush1.msra.mxu0 %v130
  %132 = vmatprep.subr.mxu0 0.0
  %v133 = vand.u32 %v41, 4294901760
  %134 = vmatpush1.msra.mxu0 %v133
  %135 = vmatprep.subr.mxu0 0.0
  %v136 = vand.u32 %v42, 4294901760
  %137 = vmatpush1.msra.mxu0 %v136
  %138 = vmatprep.subr.mxu0 0.0
  %v139 = vand.u32 %v43, 4294901760
  %140 = vmatpush1.msra.mxu0 %v139
  %141 = vmatprep.subr.mxu0 0.0
  %v142 = vand.u32 %v44, 4294901760
  %143 = vmatpush1.msra.mxu0 %v142
  %144 = vmatprep.subr.mxu0 0.0
  %v145 = vand.u32 %v45, 4294901760
  %146 = vmatpush1.msra.mxu0 %v145
  %v147 = vand.u32 %v49, 4294901760
  %v148 = vsub.f32 %v49, %v147
  %v149 = vand.u32 %v148, 4294901760
  %v150 = vsub.f32 %v148, %v149
  %v151 = vand.u32 %v150, 4294901760
  %152 = vmatprep.mubr.f32.mxu0 %v151
  %v153 = vand.u32 %v47, 4294901760
  %v154 = vsub.f32 %v47, %v153
  %v155 = vand.u32 %v154, 4294901760
  %v156 = vsub.f32 %v154, %v155
  %v157 = vand.u32 %v156, 4294901760
  %158 = vmatmul.mubr.f32.gmra.mrb[0].mxu0 %v157
  %v159 = vpop.f32.mrb[0].mxu0
  %v160 = vadd.f32 0.0, %v159
  %v161 = vpop.f32.mrb[0].mxu0
  %162 = vdwg.mxu0
  %163 = vmatprep.subr.mxu0 0.0
  %v164 = vand.u32 %v14, 4294901760
  %v165 = vsub.f32 %v14, %v164
  %v166 = vand.u32 %v165, 4294901760
  %v167 = vsub.f32 %v165, %v166
  %v168 = vand.u32 %v167, 4294901760
  %169 = vmatpush1.msra.mxu0 %v168
  %170 = vmatprep.subr.mxu0 0.0
  %v171 = vand.u32 %v15, 4294901760
  %v172 = vsub.f32 %v15, %v171
  %v173 = vand.u32 %v172, 4294901760
  %v174 = vsub.f32 %v172, %v173
  %v175 = vand.u32 %v174, 4294901760
  %176 = vmatpush1.msra.mxu0 %v175
  %177 = vmatprep.subr.mxu0 0.0
  %v178 = vand.u32 %v16, 4294901760
  %v179 = vsub.f32 %v16, %v178
  %v180 = vand.u32 %v179, 4294901760
  %v181 = vsub.f32 %v179, %v180
  %v182 = vand.u32 %v181, 4294901760
  %183 = vmatpush1.msra.mxu0 %v182
  %184 = vmatprep.subr.mxu0 0.0
  %v185 = vand.u32 %v17, 4294901760
  %v186 = vsub.f32 %v17, %v185
  %v187 = vand.u32 %v186, 4294901760
  %v188 = vsub.f32 %v186, %v187
  %v189 = vand.u32 %v188, 4294901760
  %190 = vmatpush1.msra.mxu0 %v189
  %191 = vmatprep.subr.mxu0 0.0
  %v192 = vand.u32 %v18, 4294901760
  %v193 = vsub.f32 %v18, %v192
  %v194 = vand.u32 %v193, 4294901760
  %v195 = vsub.f32 %v193, %v194
  %v196 = vand.u32 %v195, 4294901760
  %197 = vmatpush1.msra.mxu0 %v196
  %198 = vmatprep.subr.mxu0 0.0
  %v199 = vand.u32 %v19, 4294901760
  %v200 = vsub.f32 %v19, %v199
  %v201 = vand.u32 %v200, 4294901760
  %v202 = vsub.f32 %v200, %v201
  %v203 = vand.u32 %v202, 4294901760
  %204 = vmatpush1.msra.mxu0 %v203
  %205 = vmatprep.subr.mxu0 0.0
  %v206 = vand.u32 %v20, 4294901760
  %v207 = vsub.f32 %v20, %v206
  %v208 = vand.u32 %v207, 4294901760
  %v209 = vsub.f32 %v207, %v208
  %v210 = vand.u32 %v209, 4294901760
  %211 = vmatpush1.msra.mxu0 %v210
  %212 = vmatprep.subr.mxu0 0.0
  %v213 = vand.u32 %v21, 4294901760
  %v214 = vsub.f32 %v21, %v213
  %v215 = vand.u32 %v214, 4294901760
  %v216 = vsub.f32 %v214, %v215
  %v217 = vand.u32 %v216, 4294901760
  %218 = vmatpush1.msra.mxu0 %v217
  %219 = vmatprep.subr.mxu0 0.0
  %v220 = vand.u32 %v22, 4294901760
  %v221 = vsub.f32 %v22, %v220
  %v222 = vand.u32 %v221, 4294901760
  %v223 = vsub.f32 %v221, %v222
  %v224 = vand.u32 %v223, 4294901760
  %225 = vmatpush1.msra.mxu0 %v224
  %226 = vmatprep.subr.mxu0 0.0
  %v227 = vand.u32 %v23, 4294901760
  %v228 = vsub.f32 %v23, %v227
  %v229 = vand.u32 %v228, 4294901760
  %v230 = vsub.f32 %v228, %v229
  %v231 = vand.u32 %v230, 4294901760
  %232 = vmatpush1.msra.mxu0 %v231
  %233 = vmatprep.subr.mxu0 0.0
  %v234 = vand.u32 %v24, 4294901760
  %v235 = vsub.f32 %v24, %v234
  %v236 = vand.u32 %v235, 4294901760
  %v237 = vsub.f32 %v235, %v236
  %v238 = vand.u32 %v237, 4294901760
  %239 = vmatpush1.msra.mxu0 %v238
  %240 = vmatprep.subr.mxu0 0.0
  %v241 = vand.u32 %v25, 4294901760
  %v242 = vsub.f32 %v25, %v241
  %v243 = vand.u32 %v242, 4294901760
  %v244 = vsub.f32 %v242, %v243
  %v245 = vand.u32 %v244, 4294901760
  %246 = vmatpush1.msra.mxu0 %v245
  %247 = vmatprep.subr.mxu0 0.0
  %v248 = vand.u32 %v26, 4294901760
  %v249 = vsub.f32 %v26, %v248
  %v250 = vand.u32 %v249, 4294901760
  %v251 = vsub.f32 %v249, %v250
  %v252 = vand.u32 %v251, 4294901760
  %253 = vmatpush1.msra.mxu0 %v252
  %254 = vmatprep.subr.mxu0 0.0
  %v255 = vand.u32 %v27, 4294901760
  %v256 = vsub.f32 %v27, %v255
  %v257 = vand.u32 %v256, 4294901760
  %v258 = vsub.f32 %v256, %v257
  %v259 = vand.u32 %v258, 4294901760
  %260 = vmatpush1.msra.mxu0 %v259
  %261 = vmatprep.subr.mxu0 0.0
  %v262 = vand.u32 %v28, 4294901760
  %v263 = vsub.f32 %v28, %v262
  %v264 = vand.u32 %v263, 4294901760
  %v265 = vsub.f32 %v263, %v264
  %v266 = vand.u32 %v265, 4294901760
  %267 = vmatpush1.msra.mxu0 %v266
  %268 = vmatprep.subr.mxu0 0.0
  %v269 = vand.u32 %v29, 4294901760
  %v270 = vsub.f32 %v29, %v269
  %v271 = vand.u32 %v270, 4294901760
  %v272 = vsub.f32 %v270, %v271
  %v273 = vand.u32 %v272, 4294901760
  %274 = vmatpush1.msra.mxu0 %v273
  %275 = vmatprep.subr.mxu0 0.0
  %v276 = vand.u32 %v30, 4294901760
  %v277 = vsub.f32 %v30, %v276
  %v278 = vand.u32 %v277, 4294901760
  %v279 = vsub.f32 %v277, %v278
  %v280 = vand.u32 %v279, 4294901760
  %281 = vmatpush1.msra.mxu0 %v280
  %282 = vmatprep.subr.mxu0 0.0
  %v283 = vand.u32 %v31, 4294901760
  %v284 = vsub.f32 %v31, %v283
  %v285 = vand.u32 %v284, 4294901760
  %v286 = vsub.f32 %v284, %v285
  %v287 = vand.u32 %v286, 4294901760
  %288 = vmatpush1.msra.mxu0 %v287
  %289 = vmatprep.subr.mxu0 0.0
  %v290 = vand.u32 %v32, 4294901760
  %v291 = vsub.f32 %v32, %v290
  %v292 = vand.u32 %v291, 4294901760
  %v293 = vsub.f32 %v291, %v292
  %v294 = vand.u32 %v293, 4294901760
  %295 = vmatpush1.msra.mxu0 %v294
  %296 = vmatprep.subr.mxu0 0.0
  %v297 = vand.u32 %v33, 4294901760
  %v298 = vsub.f32 %v33, %v297
  %v299 = vand.u32 %v298, 4294901760
  %v300 = vsub.f32 %v298, %v299
  %v301 = vand.u32 %v300, 4294901760
  %302 = vmatpush1.msra.mxu0 %v301
  %303 = vmatprep.subr.mxu0 0.0
  %v304 = vand.u32 %v34, 4294901760
  %v305 = vsub.f32 %v34, %v304
  %v306 = vand.u32 %v305, 4294901760
  %v307 = vsub.f32 %v305, %v306
  %v308 = vand.u32 %v307, 4294901760
  %309 = vmatpush1.msra.mxu0 %v308
  %310 = vmatprep.subr.mxu0 0.0
  %v311 = vand.u32 %v35, 4294901760
  %v312 = vsub.f32 %v35, %v311
  %v313 = vand.u32 %v312, 4294901760
  %v314 = vsub.f32 %v312, %v313
  %v315 = vand.u32 %v314, 4294901760
  %316 = vmatpush1.msra.mxu0 %v315
  %317 = vmatprep.subr.mxu0 0.0
  %v318 = vand.u32 %v36, 4294901760
  %v319 = vsub.f32 %v36, %v318
  %v320 = vand.u32 %v319, 4294901760
  %v321 = vsub.f32 %v319, %v320
  %v322 = vand.u32 %v321, 4294901760
  %323 = vmatpush1.msra.mxu0 %v322
  %324 = vmatprep.subr.mxu0 0.0
  %v325 = vand.u32 %v37, 4294901760
  %v326 = vsub.f32 %v37, %v325
  %v327 = vand.u32 %v326, 4294901760
  %v328 = vsub.f32 %v326, %v327
  %v329 = vand.u32 %v328, 4294901760
  %330 = vmatpush1.msra.mxu0 %v329
  %331 = vmatprep.subr.mxu0 0.0
  %v332 = vand.u32 %v38, 4294901760
  %v333 = vsub.f32 %v38, %v332
  %v334 = vand.u32 %v333, 4294901760
  %v335 = vsub.f32 %v333, %v334
  %v336 = vand.u32 %v335, 4294901760
  %337 = vmatpush1.msra.mxu0 %v336
  %338 = vmatprep.subr.mxu0 0.0
  %v339 = vand.u32 %v39, 4294901760
  %v340 = vsub.f32 %v39, %v339
  %v341 = vand.u32 %v340, 4294901760
  %v342 = vsub.f32 %v340, %v341
  %v343 = vand.u32 %v342, 4294901760
  %344 = vmatpush1.msra.mxu0 %v343
  %345 = vmatprep.subr.mxu0 0.0
  %v346 = vand.u32 %v40, 4294901760
  %v347 = vsub.f32 %v40, %v346
  %v348 = vand.u32 %v347, 4294901760
  %v349 = vsub.f32 %v347, %v348
  %v350 = vand.u32 %v349, 4294901760
  %351 = vmatpush1.msra.mxu0 %v350
  %352 = vmatprep.subr.mxu0 0.0
  %v353 = vand.u32 %v41, 4294901760
  %v354 = vsub.f32 %v41, %v353
  %v355 = vand.u32 %v354, 4294901760
  %v356 = vsub.f32 %v354, %v355
  %v357 = vand.u32 %v356, 4294901760
  %358 = vmatpush1.msra.mxu0 %v357
  %359 = vmatprep.subr.mxu0 0.0
  %v360 = vand.u32 %v42, 4294901760
  %v361 = vsub.f32 %v42, %v360
  %v362 = vand.u32 %v361, 4294901760
  %v363 = vsub.f32 %v361, %v362
  %v364 = vand.u32 %v363, 4294901760
  %365 = vmatpush1.msra.mxu0 %v364
  %366 = vmatprep.subr.mxu0 0.0
  %v367 = vand.u32 %v43, 4294901760
  %v368 = vsub.f32 %v43, %v367
  %v369 = vand.u32 %v368, 4294901760
  %v370 = vsub.f32 %v368, %v369
  %v371 = vand.u32 %v370, 4294901760
  %372 = vmatpush1.msra.mxu0 %v371
  %373 = vmatprep.subr.mxu0 0.0
  %v374 = vand.u32 %v44, 4294901760
  %v375 = vsub.f32 %v44, %v374
  %v376 = vand.u32 %v375, 4294901760
  %v377 = vsub.f32 %v375, %v376
  %v378 = vand.u32 %v377, 4294901760
  %379 = vmatpush1.msra.mxu0 %v378
  %380 = vmatprep.subr.mxu0 0.0
  %v381 = vand.u32 %v45, 4294901760
  %v382 = vsub.f32 %v45, %v381
  %v383 = vand.u32 %v382, 4294901760
  %v384 = vsub.f32 %v382, %v383
  %v385 = vand.u32 %v384, 4294901760
  %386 = vmatpush1.msra.mxu0 %v385
  %v387 = vand.u32 %v49, 4294901760
  %388 = vmatprep.mubr.f32.mxu0 %v387
  %v389 = vand.u32 %v47, 4294901760
  %390 = vmatmul.mubr.f32.gmra.mrb[0].mxu0 %v389
  %v391 = vpop.f32.mrb[0].mxu0
  %v392 = vadd.f32 %v160, %v391
  %v393 = vpop.f32.mrb[0].mxu0
  %394 = vdwg.mxu0
  %395 = vmatprep.subr.mxu0 0.0
  %v396 = vand.u32 %v14, 4294901760
  %v397 = vsub.f32 %v14, %v396
  %398 = vmatpush1.msra.mxu0 %v397
  %399 = vmatprep.subr.mxu0 0.0
  %v400 = vand.u32 %v15, 4294901760
  %v401 = vsub.f32 %v15, %v400
  %402 = vmatpush1.msra.mxu0 %v401
  %403 = vmatprep.subr.mxu0 0.0
  %v404 = vand.u32 %v16, 4294901760
  %v405 = vsub.f32 %v16, %v404
  %406 = vmatpush1.msra.mxu0 %v405
  %407 = vmatprep.subr.mxu0 0.0
  %v408 = vand.u32 %v17, 4294901760
  %v409 = vsub.f32 %v17, %v408
  %410 = vmatpush1.msra.mxu0 %v409
  %411 = vmatprep.subr.mxu0 0.0
  %v412 = vand.u32 %v18, 4294901760
  %v413 = vsub.f32 %v18, %v412
  %414 = vmatpush1.msra.mxu0 %v413
  %415 = vmatprep.subr.mxu0 0.0
  %v416 = vand.u32 %v19, 4294901760
  %v417 = vsub.f32 %v19, %v416
  %418 = vmatpush1.msra.mxu0 %v417
  %419 = vmatprep.subr.mxu0 0.0
  %v420 = vand.u32 %v20, 4294901760
  %v421 = vsub.f32 %v20, %v420
  %422 = vmatpush1.msra.mxu0 %v421
  %423 = vmatprep.subr.mxu0 0.0
  %v424 = vand.u32 %v21, 4294901760
  %v425 = vsub.f32 %v21, %v424
  %426 = vmatpush1.msra.mxu0 %v425
  %427 = vmatprep.subr.mxu0 0.0
  %v428 = vand.u32 %v22, 4294901760
  %v429 = vsub.f32 %v22, %v428
  %430 = vmatpush1.msra.mxu0 %v429
  %431 = vmatprep.subr.mxu0 0.0
  %v432 = vand.u32 %v23, 4294901760
  %v433 = vsub.f32 %v23, %v432
  %434 = vmatpush1.msra.mxu0 %v433
  %435 = vmatprep.subr.mxu0 0.0
  %v436 = vand.u32 %v24, 4294901760
  %v437 = vsub.f32 %v24, %v436
  %438 = vmatpush1.msra.mxu0 %v437
  %439 = vmatprep.subr.mxu0 0.0
  %v440 = vand.u32 %v25, 4294901760
  %v441 = vsub.f32 %v25, %v440
  %442 = vmatpush1.msra.mxu0 %v441
  %443 = vmatprep.subr.mxu0 0.0
  %v444 = vand.u32 %v26, 4294901760
  %v445 = vsub.f32 %v26, %v444
  %446 = vmatpush1.msra.mxu0 %v445
  %447 = vmatprep.subr.mxu0 0.0
  %v448 = vand.u32 %v27, 4294901760
  %v449 = vsub.f32 %v27, %v448
  %450 = vmatpush1.msra.mxu0 %v449
  %451 = vmatprep.subr.mxu0 0.0
  %v452 = vand.u32 %v28, 4294901760
  %v453 = vsub.f32 %v28, %v452
  %454 = vmatpush1.msra.mxu0 %v453
  %455 = vmatprep.subr.mxu0 0.0
  %v456 = vand.u32 %v29, 4294901760
  %v457 = vsub.f32 %v29, %v456
  %458 = vmatpush1.msra.mxu0 %v457
  %459 = vmatprep.subr.mxu0 0.0
  %v460 = vand.u32 %v30, 4294901760
  %v461 = vsub.f32 %v30, %v460
  %462 = vmatpush1.msra.mxu0 %v461
  %463 = vmatprep.subr.mxu0 0.0
  %v464 = vand.u32 %v31, 4294901760
  %v465 = vsub.f32 %v31, %v464
  %466 = vmatpush1.msra.mxu0 %v465
  %467 = vmatprep.subr.mxu0 0.0
  %v468 = vand.u32 %v32, 4294901760
  %v469 = vsub.f32 %v32, %v468
  %470 = vmatpush1.msra.mxu0 %v469
  %471 = vmatprep.subr.mxu0 0.0
  %v472 = vand.u32 %v33, 4294901760
  %v473 = vsub.f32 %v33, %v472
  %474 = vmatpush1.msra.mxu0 %v473
  %475 = vmatprep.subr.mxu0 0.0
  %v476 = vand.u32 %v34, 4294901760
  %v477 = vsub.f32 %v34, %v476
  %478 = vmatpush1.msra.mxu0 %v477
  %479 = vmatprep.subr.mxu0 0.0
  %v480 = vand.u32 %v35, 4294901760
  %v481 = vsub.f32 %v35, %v480
  %482 = vmatpush1.msra.mxu0 %v481
  %483 = vmatprep.subr.mxu0 0.0
  %v484 = vand.u32 %v36, 4294901760
  %v485 = vsub.f32 %v36, %v484
  %486 = vmatpush1.msra.mxu0 %v485
  %487 = vmatprep.subr.mxu0 0.0
  %v488 = vand.u32 %v37, 4294901760
  %v489 = vsub.f32 %v37, %v488
  %490 = vmatpush1.msra.mxu0 %v489
  %491 = vmatprep.subr.mxu0 0.0
  %v492 = vand.u32 %v38, 4294901760
  %v493 = vsub.f32 %v38, %v492
  %494 = vmatpush1.msra.mxu0 %v493
  %495 = vmatprep.subr.mxu0 0.0
  %v496 = vand.u32 %v39, 4294901760
  %v497 = vsub.f32 %v39, %v496
  %498 = vmatpush1.msra.mxu0 %v497
  %499 = vmatprep.subr.mxu0 0.0
  %v500 = vand.u32 %v40, 4294901760
  %v501 = vsub.f32 %v40, %v500
  %502 = vmatpush1.msra.mxu0 %v501
  %503 = vmatprep.subr.mxu0 0.0
  %v504 = vand.u32 %v41, 4294901760
  %v505 = vsub.f32 %v41, %v504
  %506 = vmatpush1.msra.mxu0 %v505
  %507 = vmatprep.subr.mxu0 0.0
  %v508 = vand.u32 %v42, 4294901760
  %v509 = vsub.f32 %v42, %v508
  %510 = vmatpush1.msra.mxu0 %v509
  %511 = vmatprep.subr.mxu0 0.0
  %v512 = vand.u32 %v43, 4294901760
  %v513 = vsub.f32 %v43, %v512
  %514 = vmatpush1.msra.mxu0 %v513
  %515 = vmatprep.subr.mxu0 0.0
  %v516 = vand.u32 %v44, 4294901760
  %v517 = vsub.f32 %v44, %v516
  %518 = vmatpush1.msra.mxu0 %v517
  %519 = vmatprep.subr.mxu0 0.0
  %v520 = vand.u32 %v45, 4294901760
  %v521 = vsub.f32 %v45, %v520
  %522 = vmatpush1.msra.mxu0 %v521
  %v523 = vand.u32 %v49, 4294901760
  %v524 = vsub.f32 %v49, %v523
  %525 = vmatprep.mubr.f32.mxu0 %v524
  %v526 = vand.u32 %v47, 4294901760
  %v527 = vsub.f32 %v47, %v526
  %528 = vmatmul.mubr.f32.gmra.mrb[0].mxu0 %v527
  %v529 = vpop.f32.mrb[0].mxu0
  %v530 = vadd.f32 %v392, %v529
  %v531 = vpop.f32.mrb[0].mxu0
  %532 = vdwg.mxu0
  %533 = vmatprep.subr.mxu0 0.0
  %v534 = vand.u32 %v14, 4294901760
  %535 = vmatpush1.msra.mxu0 %v534
  %536 = vmatprep.subr.mxu0 0.0
  %v537 = vand.u32 %v15, 4294901760
  %538 = vmatpush1.msra.mxu0 %v537
  %539 = vmatprep.subr.mxu0 0.0
  %v540 = vand.u32 %v16, 4294901760
  %541 = vmatpush1.msra.mxu0 %v540
  %542 = vmatprep.subr.mxu0 0.0
  %v543 = vand.u32 %v17, 4294901760
  %544 = vmatpush1.msra.mxu0 %v543
  %545 = vmatprep.subr.mxu0 0.0
  %v546 = vand.u32 %v18, 4294901760
  %547 = vmatpush1.msra.mxu0 %v546
  %548 = vmatprep.subr.mxu0 0.0
  %v549 = vand.u32 %v19, 4294901760
  %550 = vmatpush1.msra.mxu0 %v549
  %551 = vmatprep.subr.mxu0 0.0
  %v552 = vand.u32 %v20, 4294901760
  %553 = vmatpush1.msra.mxu0 %v552
  %554 = vmatprep.subr.mxu0 0.0
  %v555 = vand.u32 %v21, 4294901760
  %556 = vmatpush1.msra.mxu0 %v555
  %557 = vmatprep.subr.mxu0 0.0
  %v558 = vand.u32 %v22, 4294901760
  %559 = vmatpush1.msra.mxu0 %v558
  %560 = vmatprep.subr.mxu0 0.0
  %v561 = vand.u32 %v23, 4294901760
  %562 = vmatpush1.msra.mxu0 %v561
  %563 = vmatprep.subr.mxu0 0.0
  %v564 = vand.u32 %v24, 4294901760
  %565 = vmatpush1.msra.mxu0 %v564
  %566 = vmatprep.subr.mxu0 0.0
  %v567 = vand.u32 %v25, 4294901760
  %568 = vmatpush1.msra.mxu0 %v567
  %569 = vmatprep.subr.mxu0 0.0
  %v570 = vand.u32 %v26, 4294901760
  %571 = vmatpush1.msra.mxu0 %v570
  %572 = vmatprep.subr.mxu0 0.0
  %v573 = vand.u32 %v27, 4294901760
  %574 = vmatpush1.msra.mxu0 %v573
  %575 = vmatprep.subr.mxu0 0.0
  %v576 = vand.u32 %v28, 4294901760
  %577 = vmatpush1.msra.mxu0 %v576
  %578 = vmatprep.subr.mxu0 0.0
  %v579 = vand.u32 %v29, 4294901760
  %580 = vmatpush1.msra.mxu0 %v579
  %581 = vmatprep.subr.mxu0 0.0
  %v582 = vand.u32 %v30, 4294901760
  %583 = vmatpush1.msra.mxu0 %v582
  %584 = vmatprep.subr.mxu0 0.0
  %v585 = vand.u32 %v31, 4294901760
  %586 = vmatpush1.msra.mxu0 %v585
  %587 = vmatprep.subr.mxu0 0.0
  %v588 = vand.u32 %v32, 4294901760
  %589 = vmatpush1.msra.mxu0 %v588
  %590 = vmatprep.subr.mxu0 0.0
  %v591 = vand.u32 %v33, 4294901760
  %592 = vmatpush1.msra.mxu0 %v591
  %593 = vmatprep.subr.mxu0 0.0
  %v594 = vand.u32 %v34, 4294901760
  %595 = vmatpush1.msra.mxu0 %v594
  %596 = vmatprep.subr.mxu0 0.0
  %v597 = vand.u32 %v35, 4294901760
  %598 = vmatpush1.msra.mxu0 %v597
  %599 = vmatprep.subr.mxu0 0.0
  %v600 = vand.u32 %v36, 4294901760
  %601 = vmatpush1.msra.mxu0 %v600
  %602 = vmatprep.subr.mxu0 0.0
  %v603 = vand.u32 %v37, 4294901760
  %604 = vmatpush1.msra.mxu0 %v603
  %605 = vmatprep.subr.mxu0 0.0
  %v606 = vand.u32 %v38, 4294901760
  %607 = vmatpush1.msra.mxu0 %v606
  %608 = vmatprep.subr.mxu0 0.0
  %v609 = vand.u32 %v39, 4294901760
  %610 = vmatpush1.msra.mxu0 %v609
  %611 = vmatprep.subr.mxu0 0.0
  %v612 = vand.u32 %v40, 4294901760
  %613 = vmatpush1.msra.mxu0 %v612
  %614 = vmatprep.subr.mxu0 0.0
  %v615 = vand.u32 %v41, 4294901760
  %616 = vmatpush1.msra.mxu0 %v615
  %617 = vmatprep.subr.mxu0 0.0
  %v618 = vand.u32 %v42, 4294901760
  %619 = vmatpush1.msra.mxu0 %v618
  %620 = vmatprep.subr.mxu0 0.0
  %v621 = vand.u32 %v43, 4294901760
  %622 = vmatpush1.msra.mxu0 %v621
  %623 = vmatprep.subr.mxu0 0.0
  %v624 = vand.u32 %v44, 4294901760
  %625 = vmatpush1.msra.mxu0 %v624
  %626 = vmatprep.subr.mxu0 0.0
  %v627 = vand.u32 %v45, 4294901760
  %628 = vmatpush1.msra.mxu0 %v627
  %v629 = vand.u32 %v49, 4294901760
  %v630 = vsub.f32 %v49, %v629
  %v631 = vand.u32 %v630, 4294901760
  %632 = vmatprep.mubr.f32.mxu0 %v631
  %v633 = vand.u32 %v47, 4294901760
  %v634 = vsub.f32 %v47, %v633
  %v635 = vand.u32 %v634, 4294901760
  %636 = vmatmul.mubr.f32.gmra.mrb[0].mxu0 %v635
  %v637 = vpop.f32.mrb[0].mxu0
  %v638 = vadd.f32 %v530, %v637
  %v639 = vpop.f32.mrb[0].mxu0
  %640 = vdwg.mxu0
  %641 = vmatprep.subr.mxu0 0.0
  %v642 = vand.u32 %v14, 4294901760
  %v643 = vsub.f32 %v14, %v642
  %v644 = vand.u32 %v643, 4294901760
  %645 = vmatpush1.msra.mxu0 %v644
  %646 = vmatprep.subr.mxu0 0.0
  %v647 = vand.u32 %v15, 4294901760
  %v648 = vsub.f32 %v15, %v647
  %v649 = vand.u32 %v648, 4294901760
  %650 = vmatpush1.msra.mxu0 %v649
  %651 = vmatprep.subr.mxu0 0.0
  %v652 = vand.u32 %v16, 4294901760
  %v653 = vsub.f32 %v16, %v652
  %v654 = vand.u32 %v653, 4294901760
  %655 = vmatpush1.msra.mxu0 %v654
  %656 = vmatprep.subr.mxu0 0.0
  %v657 = vand.u32 %v17, 4294901760
  %v658 = vsub.f32 %v17, %v657
  %v659 = vand.u32 %v658, 4294901760
  %660 = vmatpush1.msra.mxu0 %v659
  %661 = vmatprep.subr.mxu0 0.0
  %v662 = vand.u32 %v18, 4294901760
  %v663 = vsub.f32 %v18, %v662
  %v664 = vand.u32 %v663, 4294901760
  %665 = vmatpush1.msra.mxu0 %v664
  %666 = vmatprep.subr.mxu0 0.0
  %v667 = vand.u32 %v19, 4294901760
  %v668 = vsub.f32 %v19, %v667
  %v669 = vand.u32 %v668, 4294901760
  %670 = vmatpush1.msra.mxu0 %v669
  %671 = vmatprep.subr.mxu0 0.0
  %v672 = vand.u32 %v20, 4294901760
  %v673 = vsub.f32 %v20, %v672
  %v674 = vand.u32 %v673, 4294901760
  %675 = vmatpush1.msra.mxu0 %v674
  %676 = vmatprep.subr.mxu0 0.0
  %v677 = vand.u32 %v21, 4294901760
  %v678 = vsub.f32 %v21, %v677
  %v679 = vand.u32 %v678, 4294901760
  %680 = vmatpush1.msra.mxu0 %v679
  %681 = vmatprep.subr.mxu0 0.0
  %v682 = vand.u32 %v22, 4294901760
  %v683 = vsub.f32 %v22, %v682
  %v684 = vand.u32 %v683, 4294901760
  %685 = vmatpush1.msra.mxu0 %v684
  %686 = vmatprep.subr.mxu0 0.0
  %v687 = vand.u32 %v23, 4294901760
  %v688 = vsub.f32 %v23, %v687
  %v689 = vand.u32 %v688, 4294901760
  %690 = vmatpush1.msra.mxu0 %v689
  %691 = vmatprep.subr.mxu0 0.0
  %v692 = vand.u32 %v24, 4294901760
  %v693 = vsub.f32 %v24, %v692
  %v694 = vand.u32 %v693, 4294901760
  %695 = vmatpush1.msra.mxu0 %v694
  %696 = vmatprep.subr.mxu0 0.0
  %v697 = vand.u32 %v25, 4294901760
  %v698 = vsub.f32 %v25, %v697
  %v699 = vand.u32 %v698, 4294901760
  %700 = vmatpush1.msra.mxu0 %v699
  %701 = vmatprep.subr.mxu0 0.0
  %v702 = vand.u32 %v26, 4294901760
  %v703 = vsub.f32 %v26, %v702
  %v704 = vand.u32 %v703, 4294901760
  %705 = vmatpush1.msra.mxu0 %v704
  %706 = vmatprep.subr.mxu0 0.0
  %v707 = vand.u32 %v27, 4294901760
  %v708 = vsub.f32 %v27, %v707
  %v709 = vand.u32 %v708, 4294901760
  %710 = vmatpush1.msra.mxu0 %v709
  %711 = vmatprep.subr.mxu0 0.0
  %v712 = vand.u32 %v28, 4294901760
  %v713 = vsub.f32 %v28, %v712
  %v714 = vand.u32 %v713, 4294901760
  %715 = vmatpush1.msra.mxu0 %v714
  %716 = vmatprep.subr.mxu0 0.0
  %v717 = vand.u32 %v29, 4294901760
  %v718 = vsub.f32 %v29, %v717
  %v719 = vand.u32 %v718, 4294901760
  %720 = vmatpush1.msra.mxu0 %v719
  %721 = vmatprep.subr.mxu0 0.0
  %v722 = vand.u32 %v30, 4294901760
  %v723 = vsub.f32 %v30, %v722
  %v724 = vand.u32 %v723, 4294901760
  %725 = vmatpush1.msra.mxu0 %v724
  %726 = vmatprep.subr.mxu0 0.0
  %v727 = vand.u32 %v31, 4294901760
  %v728 = vsub.f32 %v31, %v727
  %v729 = vand.u32 %v728, 4294901760
  %730 = vmatpush1.msra.mxu0 %v729
  %731 = vmatprep.subr.mxu0 0.0
  %v732 = vand.u32 %v32, 4294901760
  %v733 = vsub.f32 %v32, %v732
  %v734 = vand.u32 %v733, 4294901760
  %735 = vmatpush1.msra.mxu0 %v734
  %736 = vmatprep.subr.mxu0 0.0
  %v737 = vand.u32 %v33, 4294901760
  %v738 = vsub.f32 %v33, %v737
  %v739 = vand.u32 %v738, 4294901760
  %740 = vmatpush1.msra.mxu0 %v739
  %741 = vmatprep.subr.mxu0 0.0
  %v742 = vand.u32 %v34, 4294901760
  %v743 = vsub.f32 %v34, %v742
  %v744 = vand.u32 %v743, 4294901760
  %745 = vmatpush1.msra.mxu0 %v744
  %746 = vmatprep.subr.mxu0 0.0
  %v747 = vand.u32 %v35, 4294901760
  %v748 = vsub.f32 %v35, %v747
  %v749 = vand.u32 %v748, 4294901760
  %750 = vmatpush1.msra.mxu0 %v749
  %751 = vmatprep.subr.mxu0 0.0
  %v752 = vand.u32 %v36, 4294901760
  %v753 = vsub.f32 %v36, %v752
  %v754 = vand.u32 %v753, 4294901760
  %755 = vmatpush1.msra.mxu0 %v754
  %756 = vmatprep.subr.mxu0 0.0
  %v757 = vand.u32 %v37, 4294901760
  %v758 = vsub.f32 %v37, %v757
  %v759 = vand.u32 %v758, 4294901760
  %760 = vmatpush1.msra.mxu0 %v759
  %761 = vmatprep.subr.mxu0 0.0
  %v762 = vand.u32 %v38, 4294901760
  %v763 = vsub.f32 %v38, %v762
  %v764 = vand.u32 %v763, 4294901760
  %765 = vmatpush1.msra.mxu0 %v764
  %766 = vmatprep.subr.mxu0 0.0
  %v767 = vand.u32 %v39, 4294901760
  %v768 = vsub.f32 %v39, %v767
  %v769 = vand.u32 %v768, 4294901760
  %770 = vmatpush1.msra.mxu0 %v769
  %771 = vmatprep.subr.mxu0 0.0
  %v772 = vand.u32 %v40, 4294901760
  %v773 = vsub.f32 %v40, %v772
  %v774 = vand.u32 %v773, 4294901760
  %775 = vmatpush1.msra.mxu0 %v774
  %776 = vmatprep.subr.mxu0 0.0
  %v777 = vand.u32 %v41, 4294901760
  %v778 = vsub.f32 %v41, %v777
  %v779 = vand.u32 %v778, 4294901760
  %780 = vmatpush1.msra.mxu0 %v779
  %781 = vmatprep.subr.mxu0 0.0
  %v782 = vand.u32 %v42, 4294901760
  %v783 = vsub.f32 %v42, %v782
  %v784 = vand.u32 %v783, 4294901760
  %785 = vmatpush1.msra.mxu0 %v784
  %786 = vmatprep.subr.mxu0 0.0
  %v787 = vand.u32 %v43, 4294901760
  %v788 = vsub.f32 %v43, %v787
  %v789 = vand.u32 %v788, 4294901760
  %790 = vmatpush1.msra.mxu0 %v789
  %791 = vmatprep.subr.mxu0 0.0
  %v792 = vand.u32 %v44, 4294901760
  %v793 = vsub.f32 %v44, %v792
  %v794 = vand.u32 %v793, 4294901760
  %795 = vmatpush1.msra.mxu0 %v794
  %796 = vmatprep.subr.mxu0 0.0
  %v797 = vand.u32 %v45, 4294901760
  %v798 = vsub.f32 %v45, %v797
  %v799 = vand.u32 %v798, 4294901760
  %800 = vmatpush1.msra.mxu0 %v799
  %v801 = vand.u32 %v49, 4294901760
  %802 = vmatprep.mubr.f32.mxu0 %v801
  %v803 = vand.u32 %v47, 4294901760
  %804 = vmatmul.mubr.f32.gmra.mrb[0].mxu0 %v803
  %v805 = vpop.f32.mrb[0].mxu0
  %v806 = vadd.f32 %v638, %v805
  %v807 = vpop.f32.mrb[0].mxu0
  %808 = vdwg.mxu0
  %809 = vmatprep.subr.mxu0 0.0
  %v810 = vand.u32 %v14, 4294901760
  %811 = vmatpush1.msra.mxu0 %v810
  %812 = vmatprep.subr.mxu0 0.0
  %v813 = vand.u32 %v15, 4294901760
  %814 = vmatpush1.msra.mxu0 %v813
  %815 = vmatprep.subr.mxu0 0.0
  %v816 = vand.u32 %v16, 4294901760
  %817 = vmatpush1.msra.mxu0 %v816
  %818 = vmatprep.subr.mxu0 0.0
  %v819 = vand.u32 %v17, 4294901760
  %820 = vmatpush1.msra.mxu0 %v819
  %821 = vmatprep.subr.mxu0 0.0
  %v822 = vand.u32 %v18, 4294901760
  %823 = vmatpush1.msra.mxu0 %v822
  %824 = vmatprep.subr.mxu0 0.0
  %v825 = vand.u32 %v19, 4294901760
  %826 = vmatpush1.msra.mxu0 %v825
  %827 = vmatprep.subr.mxu0 0.0
  %v828 = vand.u32 %v20, 4294901760
  %829 = vmatpush1.msra.mxu0 %v828
  %830 = vmatprep.subr.mxu0 0.0
  %v831 = vand.u32 %v21, 4294901760
  %832 = vmatpush1.msra.mxu0 %v831
  %833 = vmatprep.subr.mxu0 0.0
  %v834 = vand.u32 %v22, 4294901760
  %835 = vmatpush1.msra.mxu0 %v834
  %836 = vmatprep.subr.mxu0 0.0
  %v837 = vand.u32 %v23, 4294901760
  %838 = vmatpush1.msra.mxu0 %v837
  %839 = vmatprep.subr.mxu0 0.0
  %v840 = vand.u32 %v24, 4294901760
  %841 = vmatpush1.msra.mxu0 %v840
  %842 = vmatprep.subr.mxu0 0.0
  %v843 = vand.u32 %v25, 4294901760
  %844 = vmatpush1.msra.mxu0 %v843
  %845 = vmatprep.subr.mxu0 0.0
  %v846 = vand.u32 %v26, 4294901760
  %847 = vmatpush1.msra.mxu0 %v846
  %848 = vmatprep.subr.mxu0 0.0
  %v849 = vand.u32 %v27, 4294901760
  %850 = vmatpush1.msra.mxu0 %v849
  %851 = vmatprep.subr.mxu0 0.0
  %v852 = vand.u32 %v28, 4294901760
  %853 = vmatpush1.msra.mxu0 %v852
  %854 = vmatprep.subr.mxu0 0.0
  %v855 = vand.u32 %v29, 4294901760
  %856 = vmatpush1.msra.mxu0 %v855
  %857 = vmatprep.subr.mxu0 0.0
  %v858 = vand.u32 %v30, 4294901760
  %859 = vmatpush1.msra.mxu0 %v858
  %860 = vmatprep.subr.mxu0 0.0
  %v861 = vand.u32 %v31, 4294901760
  %862 = vmatpush1.msra.mxu0 %v861
  %863 = vmatprep.subr.mxu0 0.0
  %v864 = vand.u32 %v32, 4294901760
  %865 = vmatpush1.msra.mxu0 %v864
  %866 = vmatprep.subr.mxu0 0.0
  %v867 = vand.u32 %v33, 4294901760
  %868 = vmatpush1.msra.mxu0 %v867
  %869 = vmatprep.subr.mxu0 0.0
  %v870 = vand.u32 %v34, 4294901760
  %871 = vmatpush1.msra.mxu0 %v870
  %872 = vmatprep.subr.mxu0 0.0
  %v873 = vand.u32 %v35, 4294901760
  %874 = vmatpush1.msra.mxu0 %v873
  %875 = vmatprep.subr.mxu0 0.0
  %v876 = vand.u32 %v36, 4294901760
  %877 = vmatpush1.msra.mxu0 %v876
  %878 = vmatprep.subr.mxu0 0.0
  %v879 = vand.u32 %v37, 4294901760
  %880 = vmatpush1.msra.mxu0 %v879
  %881 = vmatprep.subr.mxu0 0.0
  %v882 = vand.u32 %v38, 4294901760
  %883 = vmatpush1.msra.mxu0 %v882
  %884 = vmatprep.subr.mxu0 0.0
  %v885 = vand.u32 %v39, 4294901760
  %886 = vmatpush1.msra.mxu0 %v885
  %887 = vmatprep.subr.mxu0 0.0
  %v888 = vand.u32 %v40, 4294901760
  %889 = vmatpush1.msra.mxu0 %v888
  %890 = vmatprep.subr.mxu0 0.0
  %v891 = vand.u32 %v41, 4294901760
  %892 = vmatpush1.msra.mxu0 %v891
  %893 = vmatprep.subr.mxu0 0.0
  %v894 = vand.u32 %v42, 4294901760
  %895 = vmatpush1.msra.mxu0 %v894
  %896 = vmatprep.subr.mxu0 0.0
  %v897 = vand.u32 %v43, 4294901760
  %898 = vmatpush1.msra.mxu0 %v897
  %899 = vmatprep.subr.mxu0 0.0
  %v900 = vand.u32 %v44, 4294901760
  %901 = vmatpush1.msra.mxu0 %v900
  %902 = vmatprep.subr.mxu0 0.0
  %v903 = vand.u32 %v45, 4294901760
  %904 = vmatpush1.msra.mxu0 %v903
  %v905 = vand.u32 %v49, 4294901760
  %906 = vmatprep.mubr.f32.mxu0 %v905
  %v907 = vand.u32 %v47, 4294901760
  %908 = vmatmul.mubr.f32.gmra.mrb[0].mxu0 %v907
  %v909 = vpop.f32.mrb[0].mxu0
  %v910 = vadd.f32 %v806, %v909
  %v911 = vpop.f32.mrb[0].mxu0
  %912 = vdwg.mxu0
  %vm913 = vcmask 31744
  %v915 = vsel %vm913, %v46, 0
  %vm917 = vcmask 1043456
  %v919 = vsel %vm917, %v910, 0
  %921 = vmatprep.subr.mxu0 0.0
  %v922 = vand.u32 %v919, 4294901760
  %923 = vmatpush1.msra.mxu0 %v922
  %924 = vmatprep.subr.mxu0 0.0
  %925 = vmatpush1.msra.mxu0 0.0
  %926 = vmatprep.subr.mxu0 0.0
  %927 = vmatpush1.msra.mxu0 0.0
  %928 = vmatprep.subr.mxu0 0.0
  %929 = vmatpush1.msra.mxu0 0.0
  %930 = vmatprep.subr.mxu0 0.0
  %931 = vmatpush1.msra.mxu0 0.0
  %932 = vmatprep.subr.mxu0 0.0
  %933 = vmatpush1.msra.mxu0 0.0
  %934 = vmatprep.subr.mxu0 0.0
  %935 = vmatpush1.msra.mxu0 0.0
  %936 = vmatprep.subr.mxu0 0.0
  %937 = vmatpush1.msra.mxu0 0.0
  %938 = vmatprep.subr.mxu0 0.0
  %939 = vmatpush1.msra.mxu0 0.0
  %940 = vmatprep.subr.mxu0 0.0
  %941 = vmatpush1.msra.mxu0 0.0
  %942 = vmatprep.subr.mxu0 0.0
  %943 = vmatpush1.msra.mxu0 0.0
  %944 = vmatprep.subr.mxu0 0.0
  %945 = vmatpush1.msra.mxu0 0.0
  %946 = vmatprep.subr.mxu0 0.0
  %947 = vmatpush1.msra.mxu0 0.0
  %948 = vmatprep.subr.mxu0 0.0
  %949 = vmatpush1.msra.mxu0 0.0
  %950 = vmatprep.subr.mxu0 0.0
  %951 = vmatpush1.msra.mxu0 0.0
  %952 = vmatprep.subr.mxu0 0.0
  %953 = vmatpush1.msra.mxu0 0.0
  %954 = vmatprep.subr.mxu0 0.0
  %955 = vmatpush1.msra.mxu0 0.0
  %956 = vmatprep.subr.mxu0 0.0
  %957 = vmatpush1.msra.mxu0 0.0
  %958 = vmatprep.subr.mxu0 0.0
  %959 = vmatpush1.msra.mxu0 0.0
  %960 = vmatprep.subr.mxu0 0.0
  %961 = vmatpush1.msra.mxu0 0.0
  %962 = vmatprep.subr.mxu0 0.0
  %963 = vmatpush1.msra.mxu0 0.0
  %964 = vmatprep.subr.mxu0 0.0
  %965 = vmatpush1.msra.mxu0 0.0
  %966 = vmatprep.subr.mxu0 0.0
  %967 = vmatpush1.msra.mxu0 0.0
  %968 = vmatprep.subr.mxu0 0.0
  %969 = vmatpush1.msra.mxu0 0.0
  %970 = vmatprep.subr.mxu0 0.0
  %971 = vmatpush1.msra.mxu0 0.0
  %972 = vmatprep.subr.mxu0 0.0
  %973 = vmatpush1.msra.mxu0 0.0
  %974 = vmatprep.subr.mxu0 0.0
  %975 = vmatpush1.msra.mxu0 0.0
  %976 = vmatprep.subr.mxu0 0.0
  %977 = vmatpush1.msra.mxu0 0.0
  %978 = vmatprep.subr.mxu0 0.0
  %979 = vmatpush1.msra.mxu0 0.0
  %980 = vmatprep.subr.mxu0 0.0
  %981 = vmatpush1.msra.mxu0 0.0
  %982 = vmatprep.subr.mxu0 0.0
  %983 = vmatpush1.msra.mxu0 0.0
  %984 = vmatprep.subr.mxu0 0.0
  %985 = vmatpush1.msra.mxu0 0.0
  %986 = vmatprep.mubr.f32.mxu0 0.0
  %v987 = vand.u32 %v915, 4294901760
  %v988 = vsub.f32 %v915, %v987
  %v989 = vand.u32 %v988, 4294901760
  %v990 = vsub.f32 %v988, %v989
  %v991 = vand.u32 %v990, 4294901760
  %992 = vmatmul.mubr.f32.gmra.mrb[0].mxu0 %v991
  %v993 = vpop.f32.mrb[0].mxu0
  %v994 = vadd.f32 0.0, %v993
  %v995 = vpop.f32.mrb[0].mxu0
  %996 = vdwg.mxu0
  %997 = vmatprep.subr.mxu0 0.0
  %v998 = vand.u32 %v919, 4294901760
  %v999 = vsub.f32 %v919, %v998
  %v1000 = vand.u32 %v999, 4294901760
  %v1001 = vsub.f32 %v999, %v1000
  %v1002 = vand.u32 %v1001, 4294901760
  %1003 = vmatpush1.msra.mxu0 %v1002
  %1004 = vmatprep.subr.mxu0 0.0
  %1005 = vmatpush1.msra.mxu0 0.0
  %1006 = vmatprep.subr.mxu0 0.0
  %1007 = vmatpush1.msra.mxu0 0.0
  %1008 = vmatprep.subr.mxu0 0.0
  %1009 = vmatpush1.msra.mxu0 0.0
  %1010 = vmatprep.subr.mxu0 0.0
  %1011 = vmatpush1.msra.mxu0 0.0
  %1012 = vmatprep.subr.mxu0 0.0
  %1013 = vmatpush1.msra.mxu0 0.0
  %1014 = vmatprep.subr.mxu0 0.0
  %1015 = vmatpush1.msra.mxu0 0.0
  %1016 = vmatprep.subr.mxu0 0.0
  %1017 = vmatpush1.msra.mxu0 0.0
  %1018 = vmatprep.subr.mxu0 0.0
  %1019 = vmatpush1.msra.mxu0 0.0
  %1020 = vmatprep.subr.mxu0 0.0
  %1021 = vmatpush1.msra.mxu0 0.0
  %1022 = vmatprep.subr.mxu0 0.0
  %1023 = vmatpush1.msra.mxu0 0.0
  %1024 = vmatprep.subr.mxu0 0.0
  %1025 = vmatpush1.msra.mxu0 0.0
  %1026 = vmatprep.subr.mxu0 0.0
  %1027 = vmatpush1.msra.mxu0 0.0
  %1028 = vmatprep.subr.mxu0 0.0
  %1029 = vmatpush1.msra.mxu0 0.0
  %1030 = vmatprep.subr.mxu0 0.0
  %1031 = vmatpush1.msra.mxu0 0.0
  %1032 = vmatprep.subr.mxu0 0.0
  %1033 = vmatpush1.msra.mxu0 0.0
  %1034 = vmatprep.subr.mxu0 0.0
  %1035 = vmatpush1.msra.mxu0 0.0
  %1036 = vmatprep.subr.mxu0 0.0
  %1037 = vmatpush1.msra.mxu0 0.0
  %1038 = vmatprep.subr.mxu0 0.0
  %1039 = vmatpush1.msra.mxu0 0.0
  %1040 = vmatprep.subr.mxu0 0.0
  %1041 = vmatpush1.msra.mxu0 0.0
  %1042 = vmatprep.subr.mxu0 0.0
  %1043 = vmatpush1.msra.mxu0 0.0
  %1044 = vmatprep.subr.mxu0 0.0
  %1045 = vmatpush1.msra.mxu0 0.0
  %1046 = vmatprep.subr.mxu0 0.0
  %1047 = vmatpush1.msra.mxu0 0.0
  %1048 = vmatprep.subr.mxu0 0.0
  %1049 = vmatpush1.msra.mxu0 0.0
  %1050 = vmatprep.subr.mxu0 0.0
  %1051 = vmatpush1.msra.mxu0 0.0
  %1052 = vmatprep.subr.mxu0 0.0
  %1053 = vmatpush1.msra.mxu0 0.0
  %1054 = vmatprep.subr.mxu0 0.0
  %1055 = vmatpush1.msra.mxu0 0.0
  %1056 = vmatprep.subr.mxu0 0.0
  %1057 = vmatpush1.msra.mxu0 0.0
  %1058 = vmatprep.subr.mxu0 0.0
  %1059 = vmatpush1.msra.mxu0 0.0
  %1060 = vmatprep.subr.mxu0 0.0
  %1061 = vmatpush1.msra.mxu0 0.0
  %1062 = vmatprep.subr.mxu0 0.0
  %1063 = vmatpush1.msra.mxu0 0.0
  %1064 = vmatprep.subr.mxu0 0.0
  %1065 = vmatpush1.msra.mxu0 0.0
  %1066 = vmatprep.mubr.f32.mxu0 0.0
  %v1067 = vand.u32 %v915, 4294901760
  %1068 = vmatmul.mubr.f32.gmra.mrb[0].mxu0 %v1067
  %v1069 = vpop.f32.mrb[0].mxu0
  %v1070 = vadd.f32 %v994, %v1069
  %v1071 = vpop.f32.mrb[0].mxu0
  %1072 = vdwg.mxu0
  %1073 = vmatprep.subr.mxu0 0.0
  %v1074 = vand.u32 %v919, 4294901760
  %v1075 = vsub.f32 %v919, %v1074
  %1076 = vmatpush1.msra.mxu0 %v1075
  %1077 = vmatprep.subr.mxu0 0.0
  %1078 = vmatpush1.msra.mxu0 0.0
  %1079 = vmatprep.subr.mxu0 0.0
  %1080 = vmatpush1.msra.mxu0 0.0
  %1081 = vmatprep.subr.mxu0 0.0
  %1082 = vmatpush1.msra.mxu0 0.0
  %1083 = vmatprep.subr.mxu0 0.0
  %1084 = vmatpush1.msra.mxu0 0.0
  %1085 = vmatprep.subr.mxu0 0.0
  %1086 = vmatpush1.msra.mxu0 0.0
  %1087 = vmatprep.subr.mxu0 0.0
  %1088 = vmatpush1.msra.mxu0 0.0
  %1089 = vmatprep.subr.mxu0 0.0
  %1090 = vmatpush1.msra.mxu0 0.0
  %1091 = vmatprep.subr.mxu0 0.0
  %1092 = vmatpush1.msra.mxu0 0.0
  %1093 = vmatprep.subr.mxu0 0.0
  %1094 = vmatpush1.msra.mxu0 0.0
  %1095 = vmatprep.subr.mxu0 0.0
  %1096 = vmatpush1.msra.mxu0 0.0
  %1097 = vmatprep.subr.mxu0 0.0
  %1098 = vmatpush1.msra.mxu0 0.0
  %1099 = vmatprep.subr.mxu0 0.0
  %1100 = vmatpush1.msra.mxu0 0.0
  %1101 = vmatprep.subr.mxu0 0.0
  %1102 = vmatpush1.msra.mxu0 0.0
  %1103 = vmatprep.subr.mxu0 0.0
  %1104 = vmatpush1.msra.mxu0 0.0
  %1105 = vmatprep.subr.mxu0 0.0
  %1106 = vmatpush1.msra.mxu0 0.0
  %1107 = vmatprep.subr.mxu0 0.0
  %1108 = vmatpush1.msra.mxu0 0.0
  %1109 = vmatprep.subr.mxu0 0.0
  %1110 = vmatpush1.msra.mxu0 0.0
  %1111 = vmatprep.subr.mxu0 0.0
  %1112 = vmatpush1.msra.mxu0 0.0
  %1113 = vmatprep.subr.mxu0 0.0
  %1114 = vmatpush1.msra.mxu0 0.0
  %1115 = vmatprep.subr.mxu0 0.0
  %1116 = vmatpush1.msra.mxu0 0.0
  %1117 = vmatprep.subr.mxu0 0.0
  %1118 = vmatpush1.msra.mxu0 0.0
  %1119 = vmatprep.subr.mxu0 0.0
  %1120 = vmatpush1.msra.mxu0 0.0
  %1121 = vmatprep.subr.mxu0 0.0
  %1122 = vmatpush1.msra.mxu0 0.0
  %1123 = vmatprep.subr.mxu0 0.0
  %1124 = vmatpush1.msra.mxu0 0.0
  %1125 = vmatprep.subr.mxu0 0.0
  %1126 = vmatpush1.msra.mxu0 0.0
  %1127 = vmatprep.subr.mxu0 0.0
  %1128 = vmatpush1.msra.mxu0 0.0
  %1129 = vmatprep.subr.mxu0 0.0
  %1130 = vmatpush1.msra.mxu0 0.0
  %1131 = vmatprep.subr.mxu0 0.0
  %1132 = vmatpush1.msra.mxu0 0.0
  %1133 = vmatprep.subr.mxu0 0.0
  %1134 = vmatpush1.msra.mxu0 0.0
  %1135 = vmatprep.subr.mxu0 0.0
  %1136 = vmatpush1.msra.mxu0 0.0
  %1137 = vmatprep.subr.mxu0 0.0
  %1138 = vmatpush1.msra.mxu0 0.0
  %1139 = vmatprep.mubr.f32.mxu0 0.0
  %v1140 = vand.u32 %v915, 4294901760
  %v1141 = vsub.f32 %v915, %v1140
  %1142 = vmatmul.mubr.f32.gmra.mrb[0].mxu0 %v1141
  %v1143 = vpop.f32.mrb[0].mxu0
  %v1144 = vadd.f32 %v1070, %v1143
  %v1145 = vpop.f32.mrb[0].mxu0
  %1146 = vdwg.mxu0
  %1147 = vmatprep.subr.mxu0 0.0
  %v1148 = vand.u32 %v919, 4294901760
  %1149 = vmatpush1.msra.mxu0 %v1148
  %1150 = vmatprep.subr.mxu0 0.0
  %1151 = vmatpush1.msra.mxu0 0.0
  %1152 = vmatprep.subr.mxu0 0.0
  %1153 = vmatpush1.msra.mxu0 0.0
  %1154 = vmatprep.subr.mxu0 0.0
  %1155 = vmatpush1.msra.mxu0 0.0
  %1156 = vmatprep.subr.mxu0 0.0
  %1157 = vmatpush1.msra.mxu0 0.0
  %1158 = vmatprep.subr.mxu0 0.0
  %1159 = vmatpush1.msra.mxu0 0.0
  %1160 = vmatprep.subr.mxu0 0.0
  %1161 = vmatpush1.msra.mxu0 0.0
  %1162 = vmatprep.subr.mxu0 0.0
  %1163 = vmatpush1.msra.mxu0 0.0
  %1164 = vmatprep.subr.mxu0 0.0
  %1165 = vmatpush1.msra.mxu0 0.0
  %1166 = vmatprep.subr.mxu0 0.0
  %1167 = vmatpush1.msra.mxu0 0.0
  %1168 = vmatprep.subr.mxu0 0.0
  %1169 = vmatpush1.msra.mxu0 0.0
  %1170 = vmatprep.subr.mxu0 0.0
  %1171 = vmatpush1.msra.mxu0 0.0
  %1172 = vmatprep.subr.mxu0 0.0
  %1173 = vmatpush1.msra.mxu0 0.0
  %1174 = vmatprep.subr.mxu0 0.0
  %1175 = vmatpush1.msra.mxu0 0.0
  %1176 = vmatprep.subr.mxu0 0.0
  %1177 = vmatpush1.msra.mxu0 0.0
  %1178 = vmatprep.subr.mxu0 0.0
  %1179 = vmatpush1.msra.mxu0 0.0
  %1180 = vmatprep.subr.mxu0 0.0
  %1181 = vmatpush1.msra.mxu0 0.0
  %1182 = vmatprep.subr.mxu0 0.0
  %1183 = vmatpush1.msra.mxu0 0.0
  %1184 = vmatprep.subr.mxu0 0.0
  %1185 = vmatpush1.msra.mxu0 0.0
  %1186 = vmatprep.subr.mxu0 0.0
  %1187 = vmatpush1.msra.mxu0 0.0
  %1188 = vmatprep.subr.mxu0 0.0
  %1189 = vmatpush1.msra.mxu0 0.0
  %1190 = vmatprep.subr.mxu0 0.0
  %1191 = vmatpush1.msra.mxu0 0.0
  %1192 = vmatprep.subr.mxu0 0.0
  %1193 = vmatpush1.msra.mxu0 0.0
  %1194 = vmatprep.subr.mxu0 0.0
  %1195 = vmatpush1.msra.mxu0 0.0
  %1196 = vmatprep.subr.mxu0 0.0
  %1197 = vmatpush1.msra.mxu0 0.0
  %1198 = vmatprep.subr.mxu0 0.0
  %1199 = vmatpush1.msra.mxu0 0.0
  %1200 = vmatprep.subr.mxu0 0.0
  %1201 = vmatpush1.msra.mxu0 0.0
  %1202 = vmatprep.subr.mxu0 0.0
  %1203 = vmatpush1.msra.mxu0 0.0
  %1204 = vmatprep.subr.mxu0 0.0
  %1205 = vmatpush1.msra.mxu0 0.0
  %1206 = vmatprep.subr.mxu0 0.0
  %1207 = vmatpush1.msra.mxu0 0.0
  %1208 = vmatprep.subr.mxu0 0.0
  %1209 = vmatpush1.msra.mxu0 0.0
  %1210 = vmatprep.subr.mxu0 0.0
  %1211 = vmatpush1.msra.mxu0 0.0
  %1212 = vmatprep.mubr.f32.mxu0 0.0
  %v1213 = vand.u32 %v915, 4294901760
  %v1214 = vsub.f32 %v915, %v1213
  %v1215 = vand.u32 %v1214, 4294901760
  %1216 = vmatmul.mubr.f32.gmra.mrb[0].mxu0 %v1215
  %v1217 = vpop.f32.mrb[0].mxu0
  %v1218 = vadd.f32 %v1144, %v1217
  %v1219 = vpop.f32.mrb[0].mxu0
  %1220 = vdwg.mxu0
  %1221 = vmatprep.subr.mxu0 0.0
  %v1222 = vand.u32 %v919, 4294901760
  %v1223 = vsub.f32 %v919, %v1222
  %v1224 = vand.u32 %v1223, 4294901760
  %1225 = vmatpush1.msra.mxu0 %v1224
  %1226 = vmatprep.subr.mxu0 0.0
  %1227 = vmatpush1.msra.mxu0 0.0
  %1228 = vmatprep.subr.mxu0 0.0
  %1229 = vmatpush1.msra.mxu0 0.0
  %1230 = vmatprep.subr.mxu0 0.0
  %1231 = vmatpush1.msra.mxu0 0.0
  %1232 = vmatprep.subr.mxu0 0.0
  %1233 = vmatpush1.msra.mxu0 0.0
  %1234 = vmatprep.subr.mxu0 0.0
  %1235 = vmatpush1.msra.mxu0 0.0
  %1236 = vmatprep.subr.mxu0 0.0
  %1237 = vmatpush1.msra.mxu0 0.0
  %1238 = vmatprep.subr.mxu0 0.0
  %1239 = vmatpush1.msra.mxu0 0.0
  %1240 = vmatprep.subr.mxu0 0.0
  %1241 = vmatpush1.msra.mxu0 0.0
  %1242 = vmatprep.subr.mxu0 0.0
  %1243 = vmatpush1.msra.mxu0 0.0
  %1244 = vmatprep.subr.mxu0 0.0
  %1245 = vmatpush1.msra.mxu0 0.0
  %1246 = vmatprep.subr.mxu0 0.0
  %1247 = vmatpush1.msra.mxu0 0.0
  %1248 = vmatprep.subr.mxu0 0.0
  %1249 = vmatpush1.msra.mxu0 0.0
  %1250 = vmatprep.subr.mxu0 0.0
  %1251 = vmatpush1.msra.mxu0 0.0
  %1252 = vmatprep.subr.mxu0 0.0
  %1253 = vmatpush1.msra.mxu0 0.0
  %1254 = vmatprep.subr.mxu0 0.0
  %1255 = vmatpush1.msra.mxu0 0.0
  %1256 = vmatprep.subr.mxu0 0.0
  %1257 = vmatpush1.msra.mxu0 0.0
  %1258 = vmatprep.subr.mxu0 0.0
  %1259 = vmatpush1.msra.mxu0 0.0
  %1260 = vmatprep.subr.mxu0 0.0
  %1261 = vmatpush1.msra.mxu0 0.0
  %1262 = vmatprep.subr.mxu0 0.0
  %1263 = vmatpush1.msra.mxu0 0.0
  %1264 = vmatprep.subr.mxu0 0.0
  %1265 = vmatpush1.msra.mxu0 0.0
  %1266 = vmatprep.subr.mxu0 0.0
  %1267 = vmatpush1.msra.mxu0 0.0
  %1268 = vmatprep.subr.mxu0 0.0
  %1269 = vmatpush1.msra.mxu0 0.0
  %1270 = vmatprep.subr.mxu0 0.0
  %1271 = vmatpush1.msra.mxu0 0.0
  %1272 = vmatprep.subr.mxu0 0.0
  %1273 = vmatpush1.msra.mxu0 0.0
  %1274 = vmatprep.subr.mxu0 0.0
  %1275 = vmatpush1.msra.mxu0 0.0
  %1276 = vmatprep.subr.mxu0 0.0
  %1277 = vmatpush1.msra.mxu0 0.0
  %1278 = vmatprep.subr.mxu0 0.0
  %1279 = vmatpush1.msra.mxu0 0.0
  %1280 = vmatprep.subr.mxu0 0.0
  %1281 = vmatpush1.msra.mxu0 0.0
  %1282 = vmatprep.subr.mxu0 0.0
  %1283 = vmatpush1.msra.mxu0 0.0
  %1284 = vmatprep.subr.mxu0 0.0
  %1285 = vmatpush1.msra.mxu0 0.0
  %1286 = vmatprep.subr.mxu0 0.0
  %1287 = vmatpush1.msra.mxu0 0.0
  %1288 = vmatprep.mubr.f32.mxu0 0.0
  %v1289 = vand.u32 %v915, 4294901760
  %1290 = vmatmul.mubr.f32.gmra.mrb[0].mxu0 %v1289
  %v1291 = vpop.f32.mrb[0].mxu0
  %v1292 = vadd.f32 %v1218, %v1291
  %v1293 = vpop.f32.mrb[0].mxu0
  %1294 = vdwg.mxu0
  %1295 = vmatprep.subr.mxu0 0.0
  %v1296 = vand.u32 %v919, 4294901760
  %1297 = vmatpush1.msra.mxu0 %v1296
  %1298 = vmatprep.subr.mxu0 0.0
  %1299 = vmatpush1.msra.mxu0 0.0
  %1300 = vmatprep.subr.mxu0 0.0
  %1301 = vmatpush1.msra.mxu0 0.0
  %1302 = vmatprep.subr.mxu0 0.0
  %1303 = vmatpush1.msra.mxu0 0.0
  %1304 = vmatprep.subr.mxu0 0.0
  %1305 = vmatpush1.msra.mxu0 0.0
  %1306 = vmatprep.subr.mxu0 0.0
  %1307 = vmatpush1.msra.mxu0 0.0
  %1308 = vmatprep.subr.mxu0 0.0
  %1309 = vmatpush1.msra.mxu0 0.0
  %1310 = vmatprep.subr.mxu0 0.0
  %1311 = vmatpush1.msra.mxu0 0.0
  %1312 = vmatprep.subr.mxu0 0.0
  %1313 = vmatpush1.msra.mxu0 0.0
  %1314 = vmatprep.subr.mxu0 0.0
  %1315 = vmatpush1.msra.mxu0 0.0
  %1316 = vmatprep.subr.mxu0 0.0
  %1317 = vmatpush1.msra.mxu0 0.0
  %1318 = vmatprep.subr.mxu0 0.0
  %1319 = vmatpush1.msra.mxu0 0.0
  %1320 = vmatprep.subr.mxu0 0.0
  %1321 = vmatpush1.msra.mxu0 0.0
  %1322 = vmatprep.subr.mxu0 0.0
  %1323 = vmatpush1.msra.mxu0 0.0
  %1324 = vmatprep.subr.mxu0 0.0
  %1325 = vmatpush1.msra.mxu0 0.0
  %1326 = vmatprep.subr.mxu0 0.0
  %1327 = vmatpush1.msra.mxu0 0.0
  %1328 = vmatprep.subr.mxu0 0.0
  %1329 = vmatpush1.msra.mxu0 0.0
  %1330 = vmatprep.subr.mxu0 0.0
  %1331 = vmatpush1.msra.mxu0 0.0
  %1332 = vmatprep.subr.mxu0 0.0
  %1333 = vmatpush1.msra.mxu0 0.0
  %1334 = vmatprep.subr.mxu0 0.0
  %1335 = vmatpush1.msra.mxu0 0.0
  %1336 = vmatprep.subr.mxu0 0.0
  %1337 = vmatpush1.msra.mxu0 0.0
  %1338 = vmatprep.subr.mxu0 0.0
  %1339 = vmatpush1.msra.mxu0 0.0
  %1340 = vmatprep.subr.mxu0 0.0
  %1341 = vmatpush1.msra.mxu0 0.0
  %1342 = vmatprep.subr.mxu0 0.0
  %1343 = vmatpush1.msra.mxu0 0.0
  %1344 = vmatprep.subr.mxu0 0.0
  %1345 = vmatpush1.msra.mxu0 0.0
  %1346 = vmatprep.subr.mxu0 0.0
  %1347 = vmatpush1.msra.mxu0 0.0
  %1348 = vmatprep.subr.mxu0 0.0
  %1349 = vmatpush1.msra.mxu0 0.0
  %1350 = vmatprep.subr.mxu0 0.0
  %1351 = vmatpush1.msra.mxu0 0.0
  %1352 = vmatprep.subr.mxu0 0.0
  %1353 = vmatpush1.msra.mxu0 0.0
  %1354 = vmatprep.subr.mxu0 0.0
  %1355 = vmatpush1.msra.mxu0 0.0
  %1356 = vmatprep.subr.mxu0 0.0
  %1357 = vmatpush1.msra.mxu0 0.0
  %1358 = vmatprep.subr.mxu0 0.0
  %1359 = vmatpush1.msra.mxu0 0.0
  %1360 = vmatprep.mubr.f32.mxu0 0.0
  %v1361 = vand.u32 %v915, 4294901760
  %1362 = vmatmul.mubr.f32.gmra.mrb[0].mxu0 %v1361
  %v1363 = vpop.f32.mrb[0].mxu0
  %v1364 = vadd.f32 %v1292, %v1363
  %v1365 = vpop.f32.mrb[0].mxu0
  %1366 = vdwg.mxu0
  %vm1367 = vcmask 519168
  %1368 = vst.msk [vmem:[%s3] sm:$0xf] %vm1367, %v1364
  %s1369 = scalar_lea.vmem %s0, 8
  %v1370 = vld [vmem:[%s1369] sm:$0xff]
  %v1372 = vcombine.high %v1370, %v1370
  %1374 = vmatprep.subr.mxu0 0.0
  %v1375 = vand.u32 %v14, 4294901760
  %1376 = vmatpush1.msra.mxu0 %v1375
  %1377 = vmatprep.subr.mxu0 0.0
  %v1378 = vand.u32 %v15, 4294901760
  %1379 = vmatpush1.msra.mxu0 %v1378
  %1380 = vmatprep.subr.mxu0 0.0
  %v1381 = vand.u32 %v16, 4294901760
  %1382 = vmatpush1.msra.mxu0 %v1381
  %1383 = vmatprep.subr.mxu0 0.0
  %v1384 = vand.u32 %v17, 4294901760
  %1385 = vmatpush1.msra.mxu0 %v1384
  %1386 = vmatprep.subr.mxu0 0.0
  %v1387 = vand.u32 %v18, 4294901760
  %1388 = vmatpush1.msra.mxu0 %v1387
  %1389 = vmatprep.subr.mxu0 0.0
  %v1390 = vand.u32 %v19, 4294901760
  %1391 = vmatpush1.msra.mxu0 %v1390
  %1392 = vmatprep.subr.mxu0 0.0
  %v1393 = vand.u32 %v20, 4294901760
  %1394 = vmatpush1.msra.mxu0 %v1393
  %1395 = vmatprep.subr.mxu0 0.0
  %v1396 = vand.u32 %v21, 4294901760
  %1397 = vmatpush1.msra.mxu0 %v1396
  %1398 = vmatprep.subr.mxu0 0.0
  %v1399 = vand.u32 %v22, 4294901760
  %1400 = vmatpush1.msra.mxu0 %v1399
  %1401 = vmatprep.subr.mxu0 0.0
  %v1402 = vand.u32 %v23, 4294901760
  %1403 = vmatpush1.msra.mxu0 %v1402
  %1404 = vmatprep.subr.mxu0 0.0
  %v1405 = vand.u32 %v24, 4294901760
  %1406 = vmatpush1.msra.mxu0 %v1405
  %1407 = vmatprep.subr.mxu0 0.0
  %v1408 = vand.u32 %v25, 4294901760
  %1409 = vmatpush1.msra.mxu0 %v1408
  %1410 = vmatprep.subr.mxu0 0.0
  %v1411 = vand.u32 %v26, 4294901760
  %1412 = vmatpush1.msra.mxu0 %v1411
  %1413 = vmatprep.subr.mxu0 0.0
  %v1414 = vand.u32 %v27, 4294901760
  %1415 = vmatpush1.msra.mxu0 %v1414
  %1416 = vmatprep.subr.mxu0 0.0
  %v1417 = vand.u32 %v28, 4294901760
  %1418 = vmatpush1.msra.mxu0 %v1417
  %1419 = vmatprep.subr.mxu0 0.0
  %v1420 = vand.u32 %v29, 4294901760
  %1421 = vmatpush1.msra.mxu0 %v1420
  %1422 = vmatprep.subr.mxu0 0.0
  %v1423 = vand.u32 %v30, 4294901760
  %1424 = vmatpush1.msra.mxu0 %v1423
  %1425 = vmatprep.subr.mxu0 0.0
  %v1426 = vand.u32 %v31, 4294901760
  %1427 = vmatpush1.msra.mxu0 %v1426
  %1428 = vmatprep.subr.mxu0 0.0
  %v1429 = vand.u32 %v32, 4294901760
  %1430 = vmatpush1.msra.mxu0 %v1429
  %1431 = vmatprep.subr.mxu0 0.0
  %v1432 = vand.u32 %v33, 4294901760
  %1433 = vmatpush1.msra.mxu0 %v1432
  %1434 = vmatprep.subr.mxu0 0.0
  %v1435 = vand.u32 %v34, 4294901760
  %1436 = vmatpush1.msra.mxu0 %v1435
  %1437 = vmatprep.subr.mxu0 0.0
  %v1438 = vand.u32 %v35, 4294901760
  %1439 = vmatpush1.msra.mxu0 %v1438
  %1440 = vmatprep.subr.mxu0 0.0
  %v1441 = vand.u32 %v36, 4294901760
  %1442 = vmatpush1.msra.mxu0 %v1441
  %1443 = vmatprep.subr.mxu0 0.0
  %v1444 = vand.u32 %v37, 4294901760
  %1445 = vmatpush1.msra.mxu0 %v1444
  %1446 = vmatprep.subr.mxu0 0.0
  %v1447 = vand.u32 %v38, 4294901760
  %1448 = vmatpush1.msra.mxu0 %v1447
  %1449 = vmatprep.subr.mxu0 0.0
  %v1450 = vand.u32 %v39, 4294901760
  %1451 = vmatpush1.msra.mxu0 %v1450
  %1452 = vmatprep.subr.mxu0 0.0
  %v1453 = vand.u32 %v40, 4294901760
  %1454 = vmatpush1.msra.mxu0 %v1453
  %1455 = vmatprep.subr.mxu0 0.0
  %v1456 = vand.u32 %v41, 4294901760
  %1457 = vmatpush1.msra.mxu0 %v1456
  %1458 = vmatprep.subr.mxu0 0.0
  %v1459 = vand.u32 %v42, 4294901760
  %1460 = vmatpush1.msra.mxu0 %v1459
  %1461 = vmatprep.subr.mxu0 0.0
  %v1462 = vand.u32 %v43, 4294901760
  %1463 = vmatpush1.msra.mxu0 %v1462
  %1464 = vmatprep.subr.mxu0 0.0
  %v1465 = vand.u32 %v44, 4294901760
  %1466 = vmatpush1.msra.mxu0 %v1465
  %1467 = vmatprep.subr.mxu0 0.0
  %v1468 = vand.u32 %v45, 4294901760
  %1469 = vmatpush1.msra.mxu0 %v1468
  %v1470 = vand.u32 %v1372, 4294901760
  %v1471 = vsub.f32 %v1372, %v1470
  %v1472 = vand.u32 %v1471, 4294901760
  %v1473 = vsub.f32 %v1471, %v1472
  %v1474 = vand.u32 %v1473, 4294901760
  %1475 = vmatprep.mubr.f32.mxu0 %v1474
  %v1476 = vand.u32 %v1370, 4294901760
  %v1477 = vsub.f32 %v1370, %v1476
  %v1478 = vand.u32 %v1477, 4294901760
  %v1479 = vsub.f32 %v1477, %v1478
  %v1480 = vand.u32 %v1479, 4294901760
  %1481 = vmatmul.mubr.f32.gmra.mrb[0].mxu0 %v1480
  %v1482 = vpop.f32.mrb[0].mxu0
  %v1483 = vadd.f32 0.0, %v1482
  %v1484 = vpop.f32.mrb[0].mxu0
  %1485 = vdwg.mxu0
  %1486 = vmatprep.subr.mxu0 0.0
  %v1487 = vand.u32 %v14, 4294901760
  %v1488 = vsub.f32 %v14, %v1487
  %v1489 = vand.u32 %v1488, 4294901760
  %v1490 = vsub.f32 %v1488, %v1489
  %v1491 = vand.u32 %v1490, 4294901760
  %1492 = vmatpush1.msra.mxu0 %v1491
  %1493 = vmatprep.subr.mxu0 0.0
  %v1494 = vand.u32 %v15, 4294901760
  %v1495 = vsub.f32 %v15, %v1494
  %v1496 = vand.u32 %v1495, 4294901760
  %v1497 = vsub.f32 %v1495, %v1496
  %v1498 = vand.u32 %v1497, 4294901760
  %1499 = vmatpush1.msra.mxu0 %v1498
  %1500 = vmatprep.subr.mxu0 0.0
  %v1501 = vand.u32 %v16, 4294901760
  %v1502 = vsub.f32 %v16, %v1501
  %v1503 = vand.u32 %v1502, 4294901760
  %v1504 = vsub.f32 %v1502, %v1503
  %v1505 = vand.u32 %v1504, 4294901760
  %1506 = vmatpush1.msra.mxu0 %v1505
  %1507 = vmatprep.subr.mxu0 0.0
  %v1508 = vand.u32 %v17, 4294901760
  %v1509 = vsub.f32 %v17, %v1508
  %v1510 = vand.u32 %v1509, 4294901760
  %v1511 = vsub.f32 %v1509, %v1510
  %v1512 = vand.u32 %v1511, 4294901760
  %1513 = vmatpush1.msra.mxu0 %v1512
  %1514 = vmatprep.subr.mxu0 0.0
  %v1515 = vand.u32 %v18, 4294901760
  %v1516 = vsub.f32 %v18, %v1515
  %v1517 = vand.u32 %v1516, 4294901760
  %v1518 = vsub.f32 %v1516, %v1517
  %v1519 = vand.u32 %v1518, 4294901760
  %1520 = vmatpush1.msra.mxu0 %v1519
  %1521 = vmatprep.subr.mxu0 0.0
  %v1522 = vand.u32 %v19, 4294901760
  %v1523 = vsub.f32 %v19, %v1522
  %v1524 = vand.u32 %v1523, 4294901760
  %v1525 = vsub.f32 %v1523, %v1524
  %v1526 = vand.u32 %v1525, 4294901760
  %1527 = vmatpush1.msra.mxu0 %v1526
  %1528 = vmatprep.subr.mxu0 0.0
  %v1529 = vand.u32 %v20, 4294901760
  %v1530 = vsub.f32 %v20, %v1529
  %v1531 = vand.u32 %v1530, 4294901760
  %v1532 = vsub.f32 %v1530, %v1531
  %v1533 = vand.u32 %v1532, 4294901760
  %1534 = vmatpush1.msra.mxu0 %v1533
  %1535 = vmatprep.subr.mxu0 0.0
  %v1536 = vand.u32 %v21, 4294901760
  %v1537 = vsub.f32 %v21, %v1536
  %v1538 = vand.u32 %v1537, 4294901760
  %v1539 = vsub.f32 %v1537, %v1538
  %v1540 = vand.u32 %v1539, 4294901760
  %1541 = vmatpush1.msra.mxu0 %v1540
  %1542 = vmatprep.subr.mxu0 0.0
  %v1543 = vand.u32 %v22, 4294901760
  %v1544 = vsub.f32 %v22, %v1543
  %v1545 = vand.u32 %v1544, 4294901760
  %v1546 = vsub.f32 %v1544, %v1545
  %v1547 = vand.u32 %v1546, 4294901760
  %1548 = vmatpush1.msra.mxu0 %v1547
  %1549 = vmatprep.subr.mxu0 0.0
  %v1550 = vand.u32 %v23, 4294901760
  %v1551 = vsub.f32 %v23, %v1550
  %v1552 = vand.u32 %v1551, 4294901760
  %v1553 = vsub.f32 %v1551, %v1552
  %v1554 = vand.u32 %v1553, 4294901760
  %1555 = vmatpush1.msra.mxu0 %v1554
  %1556 = vmatprep.subr.mxu0 0.0
  %v1557 = vand.u32 %v24, 4294901760
  %v1558 = vsub.f32 %v24, %v1557
  %v1559 = vand.u32 %v1558, 4294901760
  %v1560 = vsub.f32 %v1558, %v1559
  %v1561 = vand.u32 %v1560, 4294901760
  %1562 = vmatpush1.msra.mxu0 %v1561
  %1563 = vmatprep.subr.mxu0 0.0
  %v1564 = vand.u32 %v25, 4294901760
  %v1565 = vsub.f32 %v25, %v1564
  %v1566 = vand.u32 %v1565, 4294901760
  %v1567 = vsub.f32 %v1565, %v1566
  %v1568 = vand.u32 %v1567, 4294901760
  %1569 = vmatpush1.msra.mxu0 %v1568
  %1570 = vmatprep.subr.mxu0 0.0
  %v1571 = vand.u32 %v26, 4294901760
  %v1572 = vsub.f32 %v26, %v1571
  %v1573 = vand.u32 %v1572, 4294901760
  %v1574 = vsub.f32 %v1572, %v1573
  %v1575 = vand.u32 %v1574, 4294901760
  %1576 = vmatpush1.msra.mxu0 %v1575
  %1577 = vmatprep.subr.mxu0 0.0
  %v1578 = vand.u32 %v27, 4294901760
  %v1579 = vsub.f32 %v27, %v1578
  %v1580 = vand.u32 %v1579, 4294901760
  %v1581 = vsub.f32 %v1579, %v1580
  %v1582 = vand.u32 %v1581, 4294901760
  %1583 = vmatpush1.msra.mxu0 %v1582
  %1584 = vmatprep.subr.mxu0 0.0
  %v1585 = vand.u32 %v28, 4294901760
  %v1586 = vsub.f32 %v28, %v1585
  %v1587 = vand.u32 %v1586, 4294901760
  %v1588 = vsub.f32 %v1586, %v1587
  %v1589 = vand.u32 %v1588, 4294901760
  %1590 = vmatpush1.msra.mxu0 %v1589
  %1591 = vmatprep.subr.mxu0 0.0
  %v1592 = vand.u32 %v29, 4294901760
  %v1593 = vsub.f32 %v29, %v1592
  %v1594 = vand.u32 %v1593, 4294901760
  %v1595 = vsub.f32 %v1593, %v1594
  %v1596 = vand.u32 %v1595, 4294901760
  %1597 = vmatpush1.msra.mxu0 %v1596
  %1598 = vmatprep.subr.mxu0 0.0
  %v1599 = vand.u32 %v30, 4294901760
  %v1600 = vsub.f32 %v30, %v1599
  %v1601 = vand.u32 %v1600, 4294901760
  %v1602 = vsub.f32 %v1600, %v1601
  %v1603 = vand.u32 %v1602, 4294901760
  %1604 = vmatpush1.msra.mxu0 %v1603
  %1605 = vmatprep.subr.mxu0 0.0
  %v1606 = vand.u32 %v31, 4294901760
  %v1607 = vsub.f32 %v31, %v1606
  %v1608 = vand.u32 %v1607, 4294901760
  %v1609 = vsub.f32 %v1607, %v1608
  %v1610 = vand.u32 %v1609, 4294901760
  %1611 = vmatpush1.msra.mxu0 %v1610
  %1612 = vmatprep.subr.mxu0 0.0
  %v1613 = vand.u32 %v32, 4294901760
  %v1614 = vsub.f32 %v32, %v1613
  %v1615 = vand.u32 %v1614, 4294901760
  %v1616 = vsub.f32 %v1614, %v1615
  %v1617 = vand.u32 %v1616, 4294901760
  %1618 = vmatpush1.msra.mxu0 %v1617
  %1619 = vmatprep.subr.mxu0 0.0
  %v1620 = vand.u32 %v33, 4294901760
  %v1621 = vsub.f32 %v33, %v1620
  %v1622 = vand.u32 %v1621, 4294901760
  %v1623 = vsub.f32 %v1621, %v1622
  %v1624 = vand.u32 %v1623, 4294901760
  %1625 = vmatpush1.msra.mxu0 %v1624
  %1626 = vmatprep.subr.mxu0 0.0
  %v1627 = vand.u32 %v34, 4294901760
  %v1628 = vsub.f32 %v34, %v1627
  %v1629 = vand.u32 %v1628, 4294901760
  %v1630 = vsub.f32 %v1628, %v1629
  %v1631 = vand.u32 %v1630, 4294901760
  %1632 = vmatpush1.msra.mxu0 %v1631
  %1633 = vmatprep.subr.mxu0 0.0
  %v1634 = vand.u32 %v35, 4294901760
  %v1635 = vsub.f32 %v35, %v1634
  %v1636 = vand.u32 %v1635, 4294901760
  %v1637 = vsub.f32 %v1635, %v1636
  %v1638 = vand.u32 %v1637, 4294901760
  %1639 = vmatpush1.msra.mxu0 %v1638
  %1640 = vmatprep.subr.mxu0 0.0
  %v1641 = vand.u32 %v36, 4294901760
  %v1642 = vsub.f32 %v36, %v1641
  %v1643 = vand.u32 %v1642, 4294901760
  %v1644 = vsub.f32 %v1642, %v1643
  %v1645 = vand.u32 %v1644, 4294901760
  %1646 = vmatpush1.msra.mxu0 %v1645
  %1647 = vmatprep.subr.mxu0 0.0
  %v1648 = vand.u32 %v37, 4294901760
  %v1649 = vsub.f32 %v37, %v1648
  %v1650 = vand.u32 %v1649, 4294901760
  %v1651 = vsub.f32 %v1649, %v1650
  %v1652 = vand.u32 %v1651, 4294901760
  %1653 = vmatpush1.msra.mxu0 %v1652
  %1654 = vmatprep.subr.mxu0 0.0
  %v1655 = vand.u32 %v38, 4294901760
  %v1656 = vsub.f32 %v38, %v1655
  %v1657 = vand.u32 %v1656, 4294901760
  %v1658 = vsub.f32 %v1656, %v1657
  %v1659 = vand.u32 %v1658, 4294901760
  %1660 = vmatpush1.msra.mxu0 %v1659
  %1661 = vmatprep.subr.mxu0 0.0
  %v1662 = vand.u32 %v39, 4294901760
  %v1663 = vsub.f32 %v39, %v1662
  %v1664 = vand.u32 %v1663, 4294901760
  %v1665 = vsub.f32 %v1663, %v1664
  %v1666 = vand.u32 %v1665, 4294901760
  %1667 = vmatpush1.msra.mxu0 %v1666
  %1668 = vmatprep.subr.mxu0 0.0
  %v1669 = vand.u32 %v40, 4294901760
  %v1670 = vsub.f32 %v40, %v1669
  %v1671 = vand.u32 %v1670, 4294901760
  %v1672 = vsub.f32 %v1670, %v1671
  %v1673 = vand.u32 %v1672, 4294901760
  %1674 = vmatpush1.msra.mxu0 %v1673
  %1675 = vmatprep.subr.mxu0 0.0
  %v1676 = vand.u32 %v41, 4294901760
  %v1677 = vsub.f32 %v41, %v1676
  %v1678 = vand.u32 %v1677, 4294901760
  %v1679 = vsub.f32 %v1677, %v1678
  %v1680 = vand.u32 %v1679, 4294901760
  %1681 = vmatpush1.msra.mxu0 %v1680
  %1682 = vmatprep.subr.mxu0 0.0
  %v1683 = vand.u32 %v42, 4294901760
  %v1684 = vsub.f32 %v42, %v1683
  %v1685 = vand.u32 %v1684, 4294901760
  %v1686 = vsub.f32 %v1684, %v1685
  %v1687 = vand.u32 %v1686, 4294901760
  %1688 = vmatpush1.msra.mxu0 %v1687
  %1689 = vmatprep.subr.mxu0 0.0
  %v1690 = vand.u32 %v43, 4294901760
  %v1691 = vsub.f32 %v43, %v1690
  %v1692 = vand.u32 %v1691, 4294901760
  %v1693 = vsub.f32 %v1691, %v1692
  %v1694 = vand.u32 %v1693, 4294901760
  %1695 = vmatpush1.msra.mxu0 %v1694
  %1696 = vmatprep.subr.mxu0 0.0
  %v1697 = vand.u32 %v44, 4294901760
  %v1698 = vsub.f32 %v44, %v1697
  %v1699 = vand.u32 %v1698, 4294901760
  %v1700 = vsub.f32 %v1698, %v1699
  %v1701 = vand.u32 %v1700, 4294901760
  %1702 = vmatpush1.msra.mxu0 %v1701
  %1703 = vmatprep.subr.mxu0 0.0
  %v1704 = vand.u32 %v45, 4294901760
  %v1705 = vsub.f32 %v45, %v1704
  %v1706 = vand.u32 %v1705, 4294901760
  %v1707 = vsub.f32 %v1705, %v1706
  %v1708 = vand.u32 %v1707, 4294901760
  %1709 = vmatpush1.msra.mxu0 %v1708
  %v1710 = vand.u32 %v1372, 4294901760
  %1711 = vmatprep.mubr.f32.mxu0 %v1710
  %v1712 = vand.u32 %v1370, 4294901760
  %1713 = vmatmul.mubr.f32.gmra.mrb[0].mxu0 %v1712
  %v1714 = vpop.f32.mrb[0].mxu0
  %v1715 = vadd.f32 %v1483, %v1714
  %v1716 = vpop.f32.mrb[0].mxu0
  %1717 = vdwg.mxu0
  %1718 = vmatprep.subr.mxu0 0.0
  %v1719 = vand.u32 %v14, 4294901760
  %v1720 = vsub.f32 %v14, %v1719
  %1721 = vmatpush1.msra.mxu0 %v1720
  %1722 = vmatprep.subr.mxu0 0.0
  %v1723 = vand.u32 %v15, 4294901760
  %v1724 = vsub.f32 %v15, %v1723
  %1725 = vmatpush1.msra.mxu0 %v1724
  %1726 = vmatprep.subr.mxu0 0.0
  %v1727 = vand.u32 %v16, 4294901760
  %v1728 = vsub.f32 %v16, %v1727
  %1729 = vmatpush1.msra.mxu0 %v1728
  %1730 = vmatprep.subr.mxu0 0.0
  %v1731 = vand.u32 %v17, 4294901760
  %v1732 = vsub.f32 %v17, %v1731
  %1733 = vmatpush1.msra.mxu0 %v1732
  %1734 = vmatprep.subr.mxu0 0.0
  %v1735 = vand.u32 %v18, 4294901760
  %v1736 = vsub.f32 %v18, %v1735
  %1737 = vmatpush1.msra.mxu0 %v1736
  %1738 = vmatprep.subr.mxu0 0.0
  %v1739 = vand.u32 %v19, 4294901760
  %v1740 = vsub.f32 %v19, %v1739
  %1741 = vmatpush1.msra.mxu0 %v1740
  %1742 = vmatprep.subr.mxu0 0.0
  %v1743 = vand.u32 %v20, 4294901760
  %v1744 = vsub.f32 %v20, %v1743
  %1745 = vmatpush1.msra.mxu0 %v1744
  %1746 = vmatprep.subr.mxu0 0.0
  %v1747 = vand.u32 %v21, 4294901760
  %v1748 = vsub.f32 %v21, %v1747
  %1749 = vmatpush1.msra.mxu0 %v1748
  %1750 = vmatprep.subr.mxu0 0.0
  %v1751 = vand.u32 %v22, 4294901760
  %v1752 = vsub.f32 %v22, %v1751
  %1753 = vmatpush1.msra.mxu0 %v1752
  %1754 = vmatprep.subr.mxu0 0.0
  %v1755 = vand.u32 %v23, 4294901760
  %v1756 = vsub.f32 %v23, %v1755
  %1757 = vmatpush1.msra.mxu0 %v1756
  %1758 = vmatprep.subr.mxu0 0.0
  %v1759 = vand.u32 %v24, 4294901760
  %v1760 = vsub.f32 %v24, %v1759
  %1761 = vmatpush1.msra.mxu0 %v1760
  %1762 = vmatprep.subr.mxu0 0.0
  %v1763 = vand.u32 %v25, 4294901760
  %v1764 = vsub.f32 %v25, %v1763
  %1765 = vmatpush1.msra.mxu0 %v1764
  %1766 = vmatprep.subr.mxu0 0.0
  %v1767 = vand.u32 %v26, 4294901760
  %v1768 = vsub.f32 %v26, %v1767
  %1769 = vmatpush1.msra.mxu0 %v1768
  %1770 = vmatprep.subr.mxu0 0.0
  %v1771 = vand.u32 %v27, 4294901760
  %v1772 = vsub.f32 %v27, %v1771
  %1773 = vmatpush1.msra.mxu0 %v1772
  %1774 = vmatprep.subr.mxu0 0.0
  %v1775 = vand.u32 %v28, 4294901760
  %v1776 = vsub.f32 %v28, %v1775
  %1777 = vmatpush1.msra.mxu0 %v1776
  %1778 = vmatprep.subr.mxu0 0.0
  %v1779 = vand.u32 %v29, 4294901760
  %v1780 = vsub.f32 %v29, %v1779
  %1781 = vmatpush1.msra.mxu0 %v1780
  %1782 = vmatprep.subr.mxu0 0.0
  %v1783 = vand.u32 %v30, 4294901760
  %v1784 = vsub.f32 %v30, %v1783
  %1785 = vmatpush1.msra.mxu0 %v1784
  %1786 = vmatprep.subr.mxu0 0.0
  %v1787 = vand.u32 %v31, 4294901760
  %v1788 = vsub.f32 %v31, %v1787
  %1789 = vmatpush1.msra.mxu0 %v1788
  %1790 = vmatprep.subr.mxu0 0.0
  %v1791 = vand.u32 %v32, 4294901760
  %v1792 = vsub.f32 %v32, %v1791
  %1793 = vmatpush1.msra.mxu0 %v1792
  %1794 = vmatprep.subr.mxu0 0.0
  %v1795 = vand.u32 %v33, 4294901760
  %v1796 = vsub.f32 %v33, %v1795
  %1797 = vmatpush1.msra.mxu0 %v1796
  %1798 = vmatprep.subr.mxu0 0.0
  %v1799 = vand.u32 %v34, 4294901760
  %v1800 = vsub.f32 %v34, %v1799
  %1801 = vmatpush1.msra.mxu0 %v1800
  %1802 = vmatprep.subr.mxu0 0.0
  %v1803 = vand.u32 %v35, 4294901760
  %v1804 = vsub.f32 %v35, %v1803
  %1805 = vmatpush1.msra.mxu0 %v1804
  %1806 = vmatprep.subr.mxu0 0.0
  %v1807 = vand.u32 %v36, 4294901760
  %v1808 = vsub.f32 %v36, %v1807
  %1809 = vmatpush1.msra.mxu0 %v1808
  %1810 = vmatprep.subr.mxu0 0.0
  %v1811 = vand.u32 %v37, 4294901760
  %v1812 = vsub.f32 %v37, %v1811
  %1813 = vmatpush1.msra.mxu0 %v1812
  %1814 = vmatprep.subr.mxu0 0.0
  %v1815 = vand.u32 %v38, 4294901760
  %v1816 = vsub.f32 %v38, %v1815
  %1817 = vmatpush1.msra.mxu0 %v1816
  %1818 = vmatprep.subr.mxu0 0.0
  %v1819 = vand.u32 %v39, 4294901760
  %v1820 = vsub.f32 %v39, %v1819
  %1821 = vmatpush1.msra.mxu0 %v1820
  %1822 = vmatprep.subr.mxu0 0.0
  %v1823 = vand.u32 %v40, 4294901760
  %v1824 = vsub.f32 %v40, %v1823
  %1825 = vmatpush1.msra.mxu0 %v1824
  %1826 = vmatprep.subr.mxu0 0.0
  %v1827 = vand.u32 %v41, 4294901760
  %v1828 = vsub.f32 %v41, %v1827
  %1829 = vmatpush1.msra.mxu0 %v1828
  %1830 = vmatprep.subr.mxu0 0.0
  %v1831 = vand.u32 %v42, 4294901760
  %v1832 = vsub.f32 %v42, %v1831
  %1833 = vmatpush1.msra.mxu0 %v1832
  %1834 = vmatprep.subr.mxu0 0.0
  %v1835 = vand.u32 %v43, 4294901760
  %v1836 = vsub.f32 %v43, %v1835
  %1837 = vmatpush1.msra.mxu0 %v1836
  %1838 = vmatprep.subr.mxu0 0.0
  %v1839 = vand.u32 %v44, 4294901760
  %v1840 = vsub.f32 %v44, %v1839
  %1841 = vmatpush1.msra.mxu0 %v1840
  %1842 = vmatprep.subr.mxu0 0.0
  %v1843 = vand.u32 %v45, 4294901760
  %v1844 = vsub.f32 %v45, %v1843
  %1845 = vmatpush1.msra.mxu0 %v1844
  %v1846 = vand.u32 %v1372, 4294901760
  %v1847 = vsub.f32 %v1372, %v1846
  %1848 = vmatprep.mubr.f32.mxu0 %v1847
  %v1849 = vand.u32 %v1370, 4294901760
  %v1850 = vsub.f32 %v1370, %v1849
  %1851 = vmatmul.mubr.f32.gmra.mrb[0].mxu0 %v1850
  %v1852 = vpop.f32.mrb[0].mxu0
  %v1853 = vadd.f32 %v1715, %v1852
  %v1854 = vpop.f32.mrb[0].mxu0
  %1855 = vdwg.mxu0
  %1856 = vmatprep.subr.mxu0 0.0
  %v1857 = vand.u32 %v14, 4294901760
  %1858 = vmatpush1.msra.mxu0 %v1857
  %1859 = vmatprep.subr.mxu0 0.0
  %v1860 = vand.u32 %v15, 4294901760
  %1861 = vmatpush1.msra.mxu0 %v1860
  %1862 = vmatprep.subr.mxu0 0.0
  %v1863 = vand.u32 %v16, 4294901760
  %1864 = vmatpush1.msra.mxu0 %v1863
  %1865 = vmatprep.subr.mxu0 0.0
  %v1866 = vand.u32 %v17, 4294901760
  %1867 = vmatpush1.msra.mxu0 %v1866
  %1868 = vmatprep.subr.mxu0 0.0
  %v1869 = vand.u32 %v18, 4294901760
  %1870 = vmatpush1.msra.mxu0 %v1869
  %1871 = vmatprep.subr.mxu0 0.0
  %v1872 = vand.u32 %v19, 4294901760
  %1873 = vmatpush1.msra.mxu0 %v1872
  %1874 = vmatprep.subr.mxu0 0.0
  %v1875 = vand.u32 %v20, 4294901760
  %1876 = vmatpush1.msra.mxu0 %v1875
  %1877 = vmatprep.subr.mxu0 0.0
  %v1878 = vand.u32 %v21, 4294901760
  %1879 = vmatpush1.msra.mxu0 %v1878
  %1880 = vmatprep.subr.mxu0 0.0
  %v1881 = vand.u32 %v22, 4294901760
  %1882 = vmatpush1.msra.mxu0 %v1881
  %1883 = vmatprep.subr.mxu0 0.0
  %v1884 = vand.u32 %v23, 4294901760
  %1885 = vmatpush1.msra.mxu0 %v1884
  %1886 = vmatprep.subr.mxu0 0.0
  %v1887 = vand.u32 %v24, 4294901760
  %1888 = vmatpush1.msra.mxu0 %v1887
  %1889 = vmatprep.subr.mxu0 0.0
  %v1890 = vand.u32 %v25, 4294901760
  %1891 = vmatpush1.msra.mxu0 %v1890
  %1892 = vmatprep.subr.mxu0 0.0
  %v1893 = vand.u32 %v26, 4294901760
  %1894 = vmatpush1.msra.mxu0 %v1893
  %1895 = vmatprep.subr.mxu0 0.0
  %v1896 = vand.u32 %v27, 4294901760
  %1897 = vmatpush1.msra.mxu0 %v1896
  %1898 = vmatprep.subr.mxu0 0.0
  %v1899 = vand.u32 %v28, 4294901760
  %1900 = vmatpush1.msra.mxu0 %v1899
  %1901 = vmatprep.subr.mxu0 0.0
  %v1902 = vand.u32 %v29, 4294901760
  %1903 = vmatpush1.msra.mxu0 %v1902
  %1904 = vmatprep.subr.mxu0 0.0
  %v1905 = vand.u32 %v30, 4294901760
  %1906 = vmatpush1.msra.mxu0 %v1905
  %1907 = vmatprep.subr.mxu0 0.0
  %v1908 = vand.u32 %v31, 4294901760
  %1909 = vmatpush1.msra.mxu0 %v1908
  %1910 = vmatprep.subr.mxu0 0.0
  %v1911 = vand.u32 %v32, 4294901760
  %1912 = vmatpush1.msra.mxu0 %v1911
  %1913 = vmatprep.subr.mxu0 0.0
  %v1914 = vand.u32 %v33, 4294901760
  %1915 = vmatpush1.msra.mxu0 %v1914
  %1916 = vmatprep.subr.mxu0 0.0
  %v1917 = vand.u32 %v34, 4294901760
  %1918 = vmatpush1.msra.mxu0 %v1917
  %1919 = vmatprep.subr.mxu0 0.0
  %v1920 = vand.u32 %v35, 4294901760
  %1921 = vmatpush1.msra.mxu0 %v1920
  %1922 = vmatprep.subr.mxu0 0.0
  %v1923 = vand.u32 %v36, 4294901760
  %1924 = vmatpush1.msra.mxu0 %v1923
  %1925 = vmatprep.subr.mxu0 0.0
  %v1926 = vand.u32 %v37, 4294901760
  %1927 = vmatpush1.msra.mxu0 %v1926
  %1928 = vmatprep.subr.mxu0 0.0
  %v1929 = vand.u32 %v38, 4294901760
  %1930 = vmatpush1.msra.mxu0 %v1929
  %1931 = vmatprep.subr.mxu0 0.0
  %v1932 = vand.u32 %v39, 4294901760
  %1933 = vmatpush1.msra.mxu0 %v1932
  %1934 = vmatprep.subr.mxu0 0.0
  %v1935 = vand.u32 %v40, 4294901760
  %1936 = vmatpush1.msra.mxu0 %v1935
  %1937 = vmatprep.subr.mxu0 0.0
  %v1938 = vand.u32 %v41, 4294901760
  %1939 = vmatpush1.msra.mxu0 %v1938
  %1940 = vmatprep.subr.mxu0 0.0
  %v1941 = vand.u32 %v42, 4294901760
  %1942 = vmatpush1.msra.mxu0 %v1941
  %1943 = vmatprep.subr.mxu0 0.0
  %v1944 = vand.u32 %v43, 4294901760
  %1945 = vmatpush1.msra.mxu0 %v1944
  %1946 = vmatprep.subr.mxu0 0.0
  %v1947 = vand.u32 %v44, 4294901760
  %1948 = vmatpush1.msra.mxu0 %v1947
  %1949 = vmatprep.subr.mxu0 0.0
  %v1950 = vand.u32 %v45, 4294901760
  %1951 = vmatpush1.msra.mxu0 %v1950
  %v1952 = vand.u32 %v1372, 4294901760
  %v1953 = vsub.f32 %v1372, %v1952
  %v1954 = vand.u32 %v1953, 4294901760
  %1955 = vmatprep.mubr.f32.mxu0 %v1954
  %v1956 = vand.u32 %v1370, 4294901760
  %v1957 = vsub.f32 %v1370, %v1956
  %v1958 = vand.u32 %v1957, 4294901760
  %1959 = vmatmul.mubr.f32.gmra.mrb[0].mxu0 %v1958
  %v1960 = vpop.f32.mrb[0].mxu0
  %v1961 = vadd.f32 %v1853, %v1960
  %v1962 = vpop.f32.mrb[0].mxu0
  %1963 = vdwg.mxu0
  %1964 = vmatprep.subr.mxu0 0.0
  %v1965 = vand.u32 %v14, 4294901760
  %v1966 = vsub.f32 %v14, %v1965
  %v1967 = vand.u32 %v1966, 4294901760
  %1968 = vmatpush1.msra.mxu0 %v1967
  %1969 = vmatprep.subr.mxu0 0.0
  %v1970 = vand.u32 %v15, 4294901760
  %v1971 = vsub.f32 %v15, %v1970
  %v1972 = vand.u32 %v1971, 4294901760
  %1973 = vmatpush1.msra.mxu0 %v1972
  %1974 = vmatprep.subr.mxu0 0.0
  %v1975 = vand.u32 %v16, 4294901760
  %v1976 = vsub.f32 %v16, %v1975
  %v1977 = vand.u32 %v1976, 4294901760
  %1978 = vmatpush1.msra.mxu0 %v1977
  %1979 = vmatprep.subr.mxu0 0.0
  %v1980 = vand.u32 %v17, 4294901760
  %v1981 = vsub.f32 %v17, %v1980
  %v1982 = vand.u32 %v1981, 4294901760
  %1983 = vmatpush1.msra.mxu0 %v1982
  %1984 = vmatprep.subr.mxu0 0.0
  %v1985 = vand.u32 %v18, 4294901760
  %v1986 = vsub.f32 %v18, %v1985
  %v1987 = vand.u32 %v1986, 4294901760
  %1988 = vmatpush1.msra.mxu0 %v1987
  %1989 = vmatprep.subr.mxu0 0.0
  %v1990 = vand.u32 %v19, 4294901760
  %v1991 = vsub.f32 %v19, %v1990
  %v1992 = vand.u32 %v1991, 4294901760
  %1993 = vmatpush1.msra.mxu0 %v1992
  %1994 = vmatprep.subr.mxu0 0.0
  %v1995 = vand.u32 %v20, 4294901760
  %v1996 = vsub.f32 %v20, %v1995
  %v1997 = vand.u32 %v1996, 4294901760
  %1998 = vmatpush1.msra.mxu0 %v1997
  %1999 = vmatprep.subr.mxu0 0.0
  %v2000 = vand.u32 %v21, 4294901760
  %v2001 = vsub.f32 %v21, %v2000
  %v2002 = vand.u32 %v2001, 4294901760
  %2003 = vmatpush1.msra.mxu0 %v2002
  %2004 = vmatprep.subr.mxu0 0.0
  %v2005 = vand.u32 %v22, 4294901760
  %v2006 = vsub.f32 %v22, %v2005
  %v2007 = vand.u32 %v2006, 4294901760
  %2008 = vmatpush1.msra.mxu0 %v2007
  %2009 = vmatprep.subr.mxu0 0.0
  %v2010 = vand.u32 %v23, 4294901760
  %v2011 = vsub.f32 %v23, %v2010
  %v2012 = vand.u32 %v2011, 4294901760
  %2013 = vmatpush1.msra.mxu0 %v2012
  %2014 = vmatprep.subr.mxu0 0.0
  %v2015 = vand.u32 %v24, 4294901760
  %v2016 = vsub.f32 %v24, %v2015
  %v2017 = vand.u32 %v2016, 4294901760
  %2018 = vmatpush1.msra.mxu0 %v2017
  %2019 = vmatprep.subr.mxu0 0.0
  %v2020 = vand.u32 %v25, 4294901760
  %v2021 = vsub.f32 %v25, %v2020
  %v2022 = vand.u32 %v2021, 4294901760
  %2023 = vmatpush1.msra.mxu0 %v2022
  %2024 = vmatprep.subr.mxu0 0.0
  %v2025 = vand.u32 %v26, 4294901760
  %v2026 = vsub.f32 %v26, %v2025
  %v2027 = vand.u32 %v2026, 4294901760
  %2028 = vmatpush1.msra.mxu0 %v2027
  %2029 = vmatprep.subr.mxu0 0.0
  %v2030 = vand.u32 %v27, 4294901760
  %v2031 = vsub.f32 %v27, %v2030
  %v2032 = vand.u32 %v2031, 4294901760
  %2033 = vmatpush1.msra.mxu0 %v2032
  %2034 = vmatprep.subr.mxu0 0.0
  %v2035 = vand.u32 %v28, 4294901760
  %v2036 = vsub.f32 %v28, %v2035
  %v2037 = vand.u32 %v2036, 4294901760
  %2038 = vmatpush1.msra.mxu0 %v2037
  %2039 = vmatprep.subr.mxu0 0.0
  %v2040 = vand.u32 %v29, 4294901760
  %v2041 = vsub.f32 %v29, %v2040
  %v2042 = vand.u32 %v2041, 4294901760
  %2043 = vmatpush1.msra.mxu0 %v2042
  %2044 = vmatprep.subr.mxu0 0.0
  %v2045 = vand.u32 %v30, 4294901760
  %v2046 = vsub.f32 %v30, %v2045
  %v2047 = vand.u32 %v2046, 4294901760
  %2048 = vmatpush1.msra.mxu0 %v2047
  %2049 = vmatprep.subr.mxu0 0.0
  %v2050 = vand.u32 %v31, 4294901760
  %v2051 = vsub.f32 %v31, %v2050
  %v2052 = vand.u32 %v2051, 4294901760
  %2053 = vmatpush1.msra.mxu0 %v2052
  %2054 = vmatprep.subr.mxu0 0.0
  %v2055 = vand.u32 %v32, 4294901760
  %v2056 = vsub.f32 %v32, %v2055
  %v2057 = vand.u32 %v2056, 4294901760
  %2058 = vmatpush1.msra.mxu0 %v2057
  %2059 = vmatprep.subr.mxu0 0.0
  %v2060 = vand.u32 %v33, 4294901760
  %v2061 = vsub.f32 %v33, %v2060
  %v2062 = vand.u32 %v2061, 4294901760
  %2063 = vmatpush1.msra.mxu0 %v2062
  %2064 = vmatprep.subr.mxu0 0.0
  %v2065 = vand.u32 %v34, 4294901760
  %v2066 = vsub.f32 %v34, %v2065
  %v2067 = vand.u32 %v2066, 4294901760
  %2068 = vmatpush1.msra.mxu0 %v2067
  %2069 = vmatprep.subr.mxu0 0.0
  %v2070 = vand.u32 %v35, 4294901760
  %v2071 = vsub.f32 %v35, %v2070
  %v2072 = vand.u32 %v2071, 4294901760
  %2073 = vmatpush1.msra.mxu0 %v2072
  %2074 = vmatprep.subr.mxu0 0.0
  %v2075 = vand.u32 %v36, 4294901760
  %v2076 = vsub.f32 %v36, %v2075
  %v2077 = vand.u32 %v2076, 4294901760
  %2078 = vmatpush1.msra.mxu0 %v2077
  %2079 = vmatprep.subr.mxu0 0.0
  %v2080 = vand.u32 %v37, 4294901760
  %v2081 = vsub.f32 %v37, %v2080
  %v2082 = vand.u32 %v2081, 4294901760
  %2083 = vmatpush1.msra.mxu0 %v2082
  %2084 = vmatprep.subr.mxu0 0.0
  %v2085 = vand.u32 %v38, 4294901760
  %v2086 = vsub.f32 %v38, %v2085
  %v2087 = vand.u32 %v2086, 4294901760
  %2088 = vmatpush1.msra.mxu0 %v2087
  %2089 = vmatprep.subr.mxu0 0.0
  %v2090 = vand.u32 %v39, 4294901760
  %v2091 = vsub.f32 %v39, %v2090
  %v2092 = vand.u32 %v2091, 4294901760
  %2093 = vmatpush1.msra.mxu0 %v2092
  %2094 = vmatprep.subr.mxu0 0.0
  %v2095 = vand.u32 %v40, 4294901760
  %v2096 = vsub.f32 %v40, %v2095
  %v2097 = vand.u32 %v2096, 4294901760
  %2098 = vmatpush1.msra.mxu0 %v2097
  %2099 = vmatprep.subr.mxu0 0.0
  %v2100 = vand.u32 %v41, 4294901760
  %v2101 = vsub.f32 %v41, %v2100
  %v2102 = vand.u32 %v2101, 4294901760
  %2103 = vmatpush1.msra.mxu0 %v2102
  %2104 = vmatprep.subr.mxu0 0.0
  %v2105 = vand.u32 %v42, 4294901760
  %v2106 = vsub.f32 %v42, %v2105
  %v2107 = vand.u32 %v2106, 4294901760
  %2108 = vmatpush1.msra.mxu0 %v2107
  %2109 = vmatprep.subr.mxu0 0.0
  %v2110 = vand.u32 %v43, 4294901760
  %v2111 = vsub.f32 %v43, %v2110
  %v2112 = vand.u32 %v2111, 4294901760
  %2113 = vmatpush1.msra.mxu0 %v2112
  %2114 = vmatprep.subr.mxu0 0.0
  %v2115 = vand.u32 %v44, 4294901760
  %v2116 = vsub.f32 %v44, %v2115
  %v2117 = vand.u32 %v2116, 4294901760
  %2118 = vmatpush1.msra.mxu0 %v2117
  %2119 = vmatprep.subr.mxu0 0.0
  %v2120 = vand.u32 %v45, 4294901760
  %v2121 = vsub.f32 %v45, %v2120
  %v2122 = vand.u32 %v2121, 4294901760
  %2123 = vmatpush1.msra.mxu0 %v2122
  %v2124 = vand.u32 %v1372, 4294901760
  %2125 = vmatprep.mubr.f32.mxu0 %v2124
  %v2126 = vand.u32 %v1370, 4294901760
  %2127 = vmatmul.mubr.f32.gmra.mrb[0].mxu0 %v2126
  %v2128 = vpop.f32.mrb[0].mxu0
  %v2129 = vadd.f32 %v1961, %v2128
  %v2130 = vpop.f32.mrb[0].mxu0
  %2131 = vdwg.mxu0
  %2132 = vmatprep.subr.mxu0 0.0
  %v2133 = vand.u32 %v14, 4294901760
  %2134 = vmatpush1.msra.mxu0 %v2133
  %2135 = vmatprep.subr.mxu0 0.0
  %v2136 = vand.u32 %v15, 4294901760
  %2137 = vmatpush1.msra.mxu0 %v2136
  %2138 = vmatprep.subr.mxu0 0.0
  %v2139 = vand.u32 %v16, 4294901760
  %2140 = vmatpush1.msra.mxu0 %v2139
  %2141 = vmatprep.subr.mxu0 0.0
  %v2142 = vand.u32 %v17, 4294901760
  %2143 = vmatpush1.msra.mxu0 %v2142
  %2144 = vmatprep.subr.mxu0 0.0
  %v2145 = vand.u32 %v18, 4294901760
  %2146 = vmatpush1.msra.mxu0 %v2145
  %2147 = vmatprep.subr.mxu0 0.0
  %v2148 = vand.u32 %v19, 4294901760
  %2149 = vmatpush1.msra.mxu0 %v2148
  %2150 = vmatprep.subr.mxu0 0.0
  %v2151 = vand.u32 %v20, 4294901760
  %2152 = vmatpush1.msra.mxu0 %v2151
  %2153 = vmatprep.subr.mxu0 0.0
  %v2154 = vand.u32 %v21, 4294901760
  %2155 = vmatpush1.msra.mxu0 %v2154
  %2156 = vmatprep.subr.mxu0 0.0
  %v2157 = vand.u32 %v22, 4294901760
  %2158 = vmatpush1.msra.mxu0 %v2157
  %2159 = vmatprep.subr.mxu0 0.0
  %v2160 = vand.u32 %v23, 4294901760
  %2161 = vmatpush1.msra.mxu0 %v2160
  %2162 = vmatprep.subr.mxu0 0.0
  %v2163 = vand.u32 %v24, 4294901760
  %2164 = vmatpush1.msra.mxu0 %v2163
  %2165 = vmatprep.subr.mxu0 0.0
  %v2166 = vand.u32 %v25, 4294901760
  %2167 = vmatpush1.msra.mxu0 %v2166
  %2168 = vmatprep.subr.mxu0 0.0
  %v2169 = vand.u32 %v26, 4294901760
  %2170 = vmatpush1.msra.mxu0 %v2169
  %2171 = vmatprep.subr.mxu0 0.0
  %v2172 = vand.u32 %v27, 4294901760
  %2173 = vmatpush1.msra.mxu0 %v2172
  %2174 = vmatprep.subr.mxu0 0.0
  %v2175 = vand.u32 %v28, 4294901760
  %2176 = vmatpush1.msra.mxu0 %v2175
  %2177 = vmatprep.subr.mxu0 0.0
  %v2178 = vand.u32 %v29, 4294901760
  %2179 = vmatpush1.msra.mxu0 %v2178
  %2180 = vmatprep.subr.mxu0 0.0
  %v2181 = vand.u32 %v30, 4294901760
  %2182 = vmatpush1.msra.mxu0 %v2181
  %2183 = vmatprep.subr.mxu0 0.0
  %v2184 = vand.u32 %v31, 4294901760
  %2185 = vmatpush1.msra.mxu0 %v2184
  %2186 = vmatprep.subr.mxu0 0.0
  %v2187 = vand.u32 %v32, 4294901760
  %2188 = vmatpush1.msra.mxu0 %v2187
  %2189 = vmatprep.subr.mxu0 0.0
  %v2190 = vand.u32 %v33, 4294901760
  %2191 = vmatpush1.msra.mxu0 %v2190
  %2192 = vmatprep.subr.mxu0 0.0
  %v2193 = vand.u32 %v34, 4294901760
  %2194 = vmatpush1.msra.mxu0 %v2193
  %2195 = vmatprep.subr.mxu0 0.0
  %v2196 = vand.u32 %v35, 4294901760
  %2197 = vmatpush1.msra.mxu0 %v2196
  %2198 = vmatprep.subr.mxu0 0.0
  %v2199 = vand.u32 %v36, 4294901760
  %2200 = vmatpush1.msra.mxu0 %v2199
  %2201 = vmatprep.subr.mxu0 0.0
  %v2202 = vand.u32 %v37, 4294901760
  %2203 = vmatpush1.msra.mxu0 %v2202
  %2204 = vmatprep.subr.mxu0 0.0
  %v2205 = vand.u32 %v38, 4294901760
  %2206 = vmatpush1.msra.mxu0 %v2205
  %2207 = vmatprep.subr.mxu0 0.0
  %v2208 = vand.u32 %v39, 4294901760
  %2209 = vmatpush1.msra.mxu0 %v2208
  %2210 = vmatprep.subr.mxu0 0.0
  %v2211 = vand.u32 %v40, 4294901760
  %2212 = vmatpush1.msra.mxu0 %v2211
  %2213 = vmatprep.subr.mxu0 0.0
  %v2214 = vand.u32 %v41, 4294901760
  %2215 = vmatpush1.msra.mxu0 %v2214
  %2216 = vmatprep.subr.mxu0 0.0
  %v2217 = vand.u32 %v42, 4294901760
  %2218 = vmatpush1.msra.mxu0 %v2217
  %2219 = vmatprep.subr.mxu0 0.0
  %v2220 = vand.u32 %v43, 4294901760
  %2221 = vmatpush1.msra.mxu0 %v2220
  %2222 = vmatprep.subr.mxu0 0.0
  %v2223 = vand.u32 %v44, 4294901760
  %2224 = vmatpush1.msra.mxu0 %v2223
  %2225 = vmatprep.subr.mxu0 0.0
  %v2226 = vand.u32 %v45, 4294901760
  %2227 = vmatpush1.msra.mxu0 %v2226
  %v2228 = vand.u32 %v1372, 4294901760
  %2229 = vmatprep.mubr.f32.mxu0 %v2228
  %v2230 = vand.u32 %v1370, 4294901760
  %2231 = vmatmul.mubr.f32.gmra.mrb[0].mxu0 %v2230
  %v2232 = vpop.f32.mrb[0].mxu0
  %v2233 = vadd.f32 %v2129, %v2232
  %v2234 = vpop.f32.mrb[0].mxu0
  %2235 = vdwg.mxu0
  %v2237 = vsel %vm917, %v2233, 0
  %2239 = vmatprep.subr.mxu0 0.0
  %v2240 = vand.u32 %v2237, 4294901760
  %2241 = vmatpush1.msra.mxu0 %v2240
  %2242 = vmatprep.subr.mxu0 0.0
  %2243 = vmatpush1.msra.mxu0 0.0
  %2244 = vmatprep.subr.mxu0 0.0
  %2245 = vmatpush1.msra.mxu0 0.0
  %2246 = vmatprep.subr.mxu0 0.0
  %2247 = vmatpush1.msra.mxu0 0.0
  %2248 = vmatprep.subr.mxu0 0.0
  %2249 = vmatpush1.msra.mxu0 0.0
  %2250 = vmatprep.subr.mxu0 0.0
  %2251 = vmatpush1.msra.mxu0 0.0
  %2252 = vmatprep.subr.mxu0 0.0
  %2253 = vmatpush1.msra.mxu0 0.0
  %2254 = vmatprep.subr.mxu0 0.0
  %2255 = vmatpush1.msra.mxu0 0.0
  %2256 = vmatprep.subr.mxu0 0.0
  %2257 = vmatpush1.msra.mxu0 0.0
  %2258 = vmatprep.subr.mxu0 0.0
  %2259 = vmatpush1.msra.mxu0 0.0
  %2260 = vmatprep.subr.mxu0 0.0
  %2261 = vmatpush1.msra.mxu0 0.0
  %2262 = vmatprep.subr.mxu0 0.0
  %2263 = vmatpush1.msra.mxu0 0.0
  %2264 = vmatprep.subr.mxu0 0.0
  %2265 = vmatpush1.msra.mxu0 0.0
  %2266 = vmatprep.subr.mxu0 0.0
  %2267 = vmatpush1.msra.mxu0 0.0
  %2268 = vmatprep.subr.mxu0 0.0
  %2269 = vmatpush1.msra.mxu0 0.0
  %2270 = vmatprep.subr.mxu0 0.0
  %2271 = vmatpush1.msra.mxu0 0.0
  %2272 = vmatprep.subr.mxu0 0.0
  %2273 = vmatpush1.msra.mxu0 0.0
  %2274 = vmatprep.subr.mxu0 0.0
  %2275 = vmatpush1.msra.mxu0 0.0
  %2276 = vmatprep.subr.mxu0 0.0
  %2277 = vmatpush1.msra.mxu0 0.0
  %2278 = vmatprep.subr.mxu0 0.0
  %2279 = vmatpush1.msra.mxu0 0.0
  %2280 = vmatprep.subr.mxu0 0.0
  %2281 = vmatpush1.msra.mxu0 0.0
  %2282 = vmatprep.subr.mxu0 0.0
  %2283 = vmatpush1.msra.mxu0 0.0
  %2284 = vmatprep.subr.mxu0 0.0
  %2285 = vmatpush1.msra.mxu0 0.0
  %2286 = vmatprep.subr.mxu0 0.0
  %2287 = vmatpush1.msra.mxu0 0.0
  %2288 = vmatprep.subr.mxu0 0.0
  %2289 = vmatpush1.msra.mxu0 0.0
  %2290 = vmatprep.subr.mxu0 0.0
  %2291 = vmatpush1.msra.mxu0 0.0
  %2292 = vmatprep.subr.mxu0 0.0
  %2293 = vmatpush1.msra.mxu0 0.0
  %2294 = vmatprep.subr.mxu0 0.0
  %2295 = vmatpush1.msra.mxu0 0.0
  %2296 = vmatprep.subr.mxu0 0.0
  %2297 = vmatpush1.msra.mxu0 0.0
  %2298 = vmatprep.subr.mxu0 0.0
  %2299 = vmatpush1.msra.mxu0 0.0
  %2300 = vmatprep.subr.mxu0 0.0
  %2301 = vmatpush1.msra.mxu0 0.0
  %2302 = vmatprep.subr.mxu0 0.0
  %2303 = vmatpush1.msra.mxu0 0.0
  %2304 = vmatprep.mubr.f32.mxu0 0.0
  %v2305 = vand.u32 %v915, 4294901760
  %v2306 = vsub.f32 %v915, %v2305
  %v2307 = vand.u32 %v2306, 4294901760
  %v2308 = vsub.f32 %v2306, %v2307
  %v2309 = vand.u32 %v2308, 4294901760
  %2310 = vmatmul.mubr.f32.gmra.mrb[0].mxu0 %v2309
  %v2311 = vpop.f32.mrb[0].mxu0
  %v2312 = vadd.f32 0.0, %v2311
  %v2313 = vpop.f32.mrb[0].mxu0
  %2314 = vdwg.mxu0
  %2315 = vmatprep.subr.mxu0 0.0
  %v2316 = vand.u32 %v2237, 4294901760
  %v2317 = vsub.f32 %v2237, %v2316
  %v2318 = vand.u32 %v2317, 4294901760
  %v2319 = vsub.f32 %v2317, %v2318
  %v2320 = vand.u32 %v2319, 4294901760
  %2321 = vmatpush1.msra.mxu0 %v2320
  %2322 = vmatprep.subr.mxu0 0.0
  %2323 = vmatpush1.msra.mxu0 0.0
  %2324 = vmatprep.subr.mxu0 0.0
  %2325 = vmatpush1.msra.mxu0 0.0
  %2326 = vmatprep.subr.mxu0 0.0
  %2327 = vmatpush1.msra.mxu0 0.0
  %2328 = vmatprep.subr.mxu0 0.0
  %2329 = vmatpush1.msra.mxu0 0.0
  %2330 = vmatprep.subr.mxu0 0.0
  %2331 = vmatpush1.msra.mxu0 0.0
  %2332 = vmatprep.subr.mxu0 0.0
  %2333 = vmatpush1.msra.mxu0 0.0
  %2334 = vmatprep.subr.mxu0 0.0
  %2335 = vmatpush1.msra.mxu0 0.0
  %2336 = vmatprep.subr.mxu0 0.0
  %2337 = vmatpush1.msra.mxu0 0.0
  %2338 = vmatprep.subr.mxu0 0.0
  %2339 = vmatpush1.msra.mxu0 0.0
  %2340 = vmatprep.subr.mxu0 0.0
  %2341 = vmatpush1.msra.mxu0 0.0
  %2342 = vmatprep.subr.mxu0 0.0
  %2343 = vmatpush1.msra.mxu0 0.0
  %2344 = vmatprep.subr.mxu0 0.0
  %2345 = vmatpush1.msra.mxu0 0.0
  %2346 = vmatprep.subr.mxu0 0.0
  %2347 = vmatpush1.msra.mxu0 0.0
  %2348 = vmatprep.subr.mxu0 0.0
  %2349 = vmatpush1.msra.mxu0 0.0
  %2350 = vmatprep.subr.mxu0 0.0
  %2351 = vmatpush1.msra.mxu0 0.0
  %2352 = vmatprep.subr.mxu0 0.0
  %2353 = vmatpush1.msra.mxu0 0.0
  %2354 = vmatprep.subr.mxu0 0.0
  %2355 = vmatpush1.msra.mxu0 0.0
  %2356 = vmatprep.subr.mxu0 0.0
  %2357 = vmatpush1.msra.mxu0 0.0
  %2358 = vmatprep.subr.mxu0 0.0
  %2359 = vmatpush1.msra.mxu0 0.0
  %2360 = vmatprep.subr.mxu0 0.0
  %2361 = vmatpush1.msra.mxu0 0.0
  %2362 = vmatprep.subr.mxu0 0.0
  %2363 = vmatpush1.msra.mxu0 0.0
  %2364 = vmatprep.subr.mxu0 0.0
  %2365 = vmatpush1.msra.mxu0 0.0
  %2366 = vmatprep.subr.mxu0 0.0
  %2367 = vmatpush1.msra.mxu0 0.0
  %2368 = vmatprep.subr.mxu0 0.0
  %2369 = vmatpush1.msra.mxu0 0.0
  %2370 = vmatprep.subr.mxu0 0.0
  %2371 = vmatpush1.msra.mxu0 0.0
  %2372 = vmatprep.subr.mxu0 0.0
  %2373 = vmatpush1.msra.mxu0 0.0
  %2374 = vmatprep.subr.mxu0 0.0
  %2375 = vmatpush1.msra.mxu0 0.0
  %2376 = vmatprep.subr.mxu0 0.0
  %2377 = vmatpush1.msra.mxu0 0.0
  %2378 = vmatprep.subr.mxu0 0.0
  %2379 = vmatpush1.msra.mxu0 0.0
  %2380 = vmatprep.subr.mxu0 0.0
  %2381 = vmatpush1.msra.mxu0 0.0
  %2382 = vmatprep.subr.mxu0 0.0
  %2383 = vmatpush1.msra.mxu0 0.0
  %2384 = vmatprep.mubr.f32.mxu0 0.0
  %v2385 = vand.u32 %v915, 4294901760
  %2386 = vmatmul.mubr.f32.gmra.mrb[0].mxu0 %v2385
  %v2387 = vpop.f32.mrb[0].mxu0
  %v2388 = vadd.f32 %v2312, %v2387
  %v2389 = vpop.f32.mrb[0].mxu0
  %2390 = vdwg.mxu0
  %2391 = vmatprep.subr.mxu0 0.0
  %v2392 = vand.u32 %v2237, 4294901760
  %v2393 = vsub.f32 %v2237, %v2392
  %2394 = vmatpush1.msra.mxu0 %v2393
  %2395 = vmatprep.subr.mxu0 0.0
  %2396 = vmatpush1.msra.mxu0 0.0
  %2397 = vmatprep.subr.mxu0 0.0
  %2398 = vmatpush1.msra.mxu0 0.0
  %2399 = vmatprep.subr.mxu0 0.0
  %2400 = vmatpush1.msra.mxu0 0.0
  %2401 = vmatprep.subr.mxu0 0.0
  %2402 = vmatpush1.msra.mxu0 0.0
  %2403 = vmatprep.subr.mxu0 0.0
  %2404 = vmatpush1.msra.mxu0 0.0
  %2405 = vmatprep.subr.mxu0 0.0
  %2406 = vmatpush1.msra.mxu0 0.0
  %2407 = vmatprep.subr.mxu0 0.0
  %2408 = vmatpush1.msra.mxu0 0.0
  %2409 = vmatprep.subr.mxu0 0.0
  %2410 = vmatpush1.msra.mxu0 0.0
  %2411 = vmatprep.subr.mxu0 0.0
  %2412 = vmatpush1.msra.mxu0 0.0
  %2413 = vmatprep.subr.mxu0 0.0
  %2414 = vmatpush1.msra.mxu0 0.0
  %2415 = vmatprep.subr.mxu0 0.0
  %2416 = vmatpush1.msra.mxu0 0.0
  %2417 = vmatprep.subr.mxu0 0.0
  %2418 = vmatpush1.msra.mxu0 0.0
  %2419 = vmatprep.subr.mxu0 0.0
  %2420 = vmatpush1.msra.mxu0 0.0
  %2421 = vmatprep.subr.mxu0 0.0
  %2422 = vmatpush1.msra.mxu0 0.0
  %2423 = vmatprep.subr.mxu0 0.0
  %2424 = vmatpush1.msra.mxu0 0.0
  %2425 = vmatprep.subr.mxu0 0.0
  %2426 = vmatpush1.msra.mxu0 0.0
  %2427 = vmatprep.subr.mxu0 0.0
  %2428 = vmatpush1.msra.mxu0 0.0
  %2429 = vmatprep.subr.mxu0 0.0
  %2430 = vmatpush1.msra.mxu0 0.0
  %2431 = vmatprep.subr.mxu0 0.0
  %2432 = vmatpush1.msra.mxu0 0.0
  %2433 = vmatprep.subr.mxu0 0.0
  %2434 = vmatpush1.msra.mxu0 0.0
  %2435 = vmatprep.subr.mxu0 0.0
  %2436 = vmatpush1.msra.mxu0 0.0
  %2437 = vmatprep.subr.mxu0 0.0
  %2438 = vmatpush1.msra.mxu0 0.0
  %2439 = vmatprep.subr.mxu0 0.0
  %2440 = vmatpush1.msra.mxu0 0.0
  %2441 = vmatprep.subr.mxu0 0.0
  %2442 = vmatpush1.msra.mxu0 0.0
  %2443 = vmatprep.subr.mxu0 0.0
  %2444 = vmatpush1.msra.mxu0 0.0
  %2445 = vmatprep.subr.mxu0 0.0
  %2446 = vmatpush1.msra.mxu0 0.0
  %2447 = vmatprep.subr.mxu0 0.0
  %2448 = vmatpush1.msra.mxu0 0.0
  %2449 = vmatprep.subr.mxu0 0.0
  %2450 = vmatpush1.msra.mxu0 0.0
  %2451 = vmatprep.subr.mxu0 0.0
  %2452 = vmatpush1.msra.mxu0 0.0
  %2453 = vmatprep.subr.mxu0 0.0
  %2454 = vmatpush1.msra.mxu0 0.0
  %2455 = vmatprep.subr.mxu0 0.0
  %2456 = vmatpush1.msra.mxu0 0.0
  %2457 = vmatprep.mubr.f32.mxu0 0.0
  %v2458 = vand.u32 %v915, 4294901760
  %v2459 = vsub.f32 %v915, %v2458
  %2460 = vmatmul.mubr.f32.gmra.mrb[0].mxu0 %v2459
  %v2461 = vpop.f32.mrb[0].mxu0
  %v2462 = vadd.f32 %v2388, %v2461
  %v2463 = vpop.f32.mrb[0].mxu0
  %2464 = vdwg.mxu0
  %2465 = vmatprep.subr.mxu0 0.0
  %v2466 = vand.u32 %v2237, 4294901760
  %2467 = vmatpush1.msra.mxu0 %v2466
  %2468 = vmatprep.subr.mxu0 0.0
  %2469 = vmatpush1.msra.mxu0 0.0
  %2470 = vmatprep.subr.mxu0 0.0
  %2471 = vmatpush1.msra.mxu0 0.0
  %2472 = vmatprep.subr.mxu0 0.0
  %2473 = vmatpush1.msra.mxu0 0.0
  %2474 = vmatprep.subr.mxu0 0.0
  %2475 = vmatpush1.msra.mxu0 0.0
  %2476 = vmatprep.subr.mxu0 0.0
  %2477 = vmatpush1.msra.mxu0 0.0
  %2478 = vmatprep.subr.mxu0 0.0
  %2479 = vmatpush1.msra.mxu0 0.0
  %2480 = vmatprep.subr.mxu0 0.0
  %2481 = vmatpush1.msra.mxu0 0.0
  %2482 = vmatprep.subr.mxu0 0.0
  %2483 = vmatpush1.msra.mxu0 0.0
  %2484 = vmatprep.subr.mxu0 0.0
  %2485 = vmatpush1.msra.mxu0 0.0
  %2486 = vmatprep.subr.mxu0 0.0
  %2487 = vmatpush1.msra.mxu0 0.0
  %2488 = vmatprep.subr.mxu0 0.0
  %2489 = vmatpush1.msra.mxu0 0.0
  %2490 = vmatprep.subr.mxu0 0.0
  %2491 = vmatpush1.msra.mxu0 0.0
  %2492 = vmatprep.subr.mxu0 0.0
  %2493 = vmatpush1.msra.mxu0 0.0
  %2494 = vmatprep.subr.mxu0 0.0
  %2495 = vmatpush1.msra.mxu0 0.0
  %2496 = vmatprep.subr.mxu0 0.0
  %2497 = vmatpush1.msra.mxu0 0.0
  %2498 = vmatprep.subr.mxu0 0.0
  %2499 = vmatpush1.msra.mxu0 0.0
  %2500 = vmatprep.subr.mxu0 0.0
  %2501 = vmatpush1.msra.mxu0 0.0
  %2502 = vmatprep.subr.mxu0 0.0
  %2503 = vmatpush1.msra.mxu0 0.0
  %2504 = vmatprep.subr.mxu0 0.0
  %2505 = vmatpush1.msra.mxu0 0.0
  %2506 = vmatprep.subr.mxu0 0.0
  %2507 = vmatpush1.msra.mxu0 0.0
  %2508 = vmatprep.subr.mxu0 0.0
  %2509 = vmatpush1.msra.mxu0 0.0
  %2510 = vmatprep.subr.mxu0 0.0
  %2511 = vmatpush1.msra.mxu0 0.0
  %2512 = vmatprep.subr.mxu0 0.0
  %2513 = vmatpush1.msra.mxu0 0.0
  %2514 = vmatprep.subr.mxu0 0.0
  %2515 = vmatpush1.msra.mxu0 0.0
  %2516 = vmatprep.subr.mxu0 0.0
  %2517 = vmatpush1.msra.mxu0 0.0
  %2518 = vmatprep.subr.mxu0 0.0
  %2519 = vmatpush1.msra.mxu0 0.0
  %2520 = vmatprep.subr.mxu0 0.0
  %2521 = vmatpush1.msra.mxu0 0.0
  %2522 = vmatprep.subr.mxu0 0.0
  %2523 = vmatpush1.msra.mxu0 0.0
  %2524 = vmatprep.subr.mxu0 0.0
  %2525 = vmatpush1.msra.mxu0 0.0
  %2526 = vmatprep.subr.mxu0 0.0
  %2527 = vmatpush1.msra.mxu0 0.0
  %2528 = vmatprep.subr.mxu0 0.0
  %2529 = vmatpush1.msra.mxu0 0.0
  %2530 = vmatprep.mubr.f32.mxu0 0.0
  %v2531 = vand.u32 %v915, 4294901760
  %v2532 = vsub.f32 %v915, %v2531
  %v2533 = vand.u32 %v2532, 4294901760
  %2534 = vmatmul.mubr.f32.gmra.mrb[0].mxu0 %v2533
  %v2535 = vpop.f32.mrb[0].mxu0
  %v2536 = vadd.f32 %v2462, %v2535
  %v2537 = vpop.f32.mrb[0].mxu0
  %2538 = vdwg.mxu0
  %2539 = vmatprep.subr.mxu0 0.0
  %v2540 = vand.u32 %v2237, 4294901760
  %v2541 = vsub.f32 %v2237, %v2540
  %v2542 = vand.u32 %v2541, 4294901760
  %2543 = vmatpush1.msra.mxu0 %v2542
  %2544 = vmatprep.subr.mxu0 0.0
  %2545 = vmatpush1.msra.mxu0 0.0
  %2546 = vmatprep.subr.mxu0 0.0
  %2547 = vmatpush1.msra.mxu0 0.0
  %2548 = vmatprep.subr.mxu0 0.0
  %2549 = vmatpush1.msra.mxu0 0.0
  %2550 = vmatprep.subr.mxu0 0.0
  %2551 = vmatpush1.msra.mxu0 0.0
  %2552 = vmatprep.subr.mxu0 0.0
  %2553 = vmatpush1.msra.mxu0 0.0
  %2554 = vmatprep.subr.mxu0 0.0
  %2555 = vmatpush1.msra.mxu0 0.0
  %2556 = vmatprep.subr.mxu0 0.0
  %2557 = vmatpush1.msra.mxu0 0.0
  %2558 = vmatprep.subr.mxu0 0.0
  %2559 = vmatpush1.msra.mxu0 0.0
  %2560 = vmatprep.subr.mxu0 0.0
  %2561 = vmatpush1.msra.mxu0 0.0
  %2562 = vmatprep.subr.mxu0 0.0
  %2563 = vmatpush1.msra.mxu0 0.0
  %2564 = vmatprep.subr.mxu0 0.0
  %2565 = vmatpush1.msra.mxu0 0.0
  %2566 = vmatprep.subr.mxu0 0.0
  %2567 = vmatpush1.msra.mxu0 0.0
  %2568 = vmatprep.subr.mxu0 0.0
  %2569 = vmatpush1.msra.mxu0 0.0
  %2570 = vmatprep.subr.mxu0 0.0
  %2571 = vmatpush1.msra.mxu0 0.0
  %2572 = vmatprep.subr.mxu0 0.0
  %2573 = vmatpush1.msra.mxu0 0.0
  %2574 = vmatprep.subr.mxu0 0.0
  %2575 = vmatpush1.msra.mxu0 0.0
  %2576 = vmatprep.subr.mxu0 0.0
  %2577 = vmatpush1.msra.mxu0 0.0
  %2578 = vmatprep.subr.mxu0 0.0
  %2579 = vmatpush1.msra.mxu0 0.0
  %2580 = vmatprep.subr.mxu0 0.0
  %2581 = vmatpush1.msra.mxu0 0.0
  %2582 = vmatprep.subr.mxu0 0.0
  %2583 = vmatpush1.msra.mxu0 0.0
  %2584 = vmatprep.subr.mxu0 0.0
  %2585 = vmatpush1.msra.mxu0 0.0
  %2586 = vmatprep.subr.mxu0 0.0
  %2587 = vmatpush1.msra.mxu0 0.0
  %2588 = vmatprep.subr.mxu0 0.0
  %2589 = vmatpush1.msra.mxu0 0.0
  %2590 = vmatprep.subr.mxu0 0.0
  %2591 = vmatpush1.msra.mxu0 0.0
  %2592 = vmatprep.subr.mxu0 0.0
  %2593 = vmatpush1.msra.mxu0 0.0
  %2594 = vmatprep.subr.mxu0 0.0
  %2595 = vmatpush1.msra.mxu0 0.0
  %2596 = vmatprep.subr.mxu0 0.0
  %2597 = vmatpush1.msra.mxu0 0.0
  %2598 = vmatprep.subr.mxu0 0.0
  %2599 = vmatpush1.msra.mxu0 0.0
  %2600 = vmatprep.subr.mxu0 0.0
  %2601 = vmatpush1.msra.mxu0 0.0
  %2602 = vmatprep.subr.mxu0 0.0
  %2603 = vmatpush1.msra.mxu0 0.0
  %2604 = vmatprep.subr.mxu0 0.0
  %2605 = vmatpush1.msra.mxu0 0.0
  %2606 = vmatprep.mubr.f32.mxu0 0.0
  %v2607 = vand.u32 %v915, 4294901760
  %2608 = vmatmul.mubr.f32.gmra.mrb[0].mxu0 %v2607
  %v2609 = vpop.f32.mrb[0].mxu0
  %v2610 = vadd.f32 %v2536, %v2609
  %v2611 = vpop.f32.mrb[0].mxu0
  %2612 = vdwg.mxu0
  %2613 = vmatprep.subr.mxu0 0.0
  %v2614 = vand.u32 %v2237, 4294901760
  %2615 = vmatpush1.msra.mxu0 %v2614
  %2616 = vmatprep.subr.mxu0 0.0
  %2617 = vmatpush1.msra.mxu0 0.0
  %2618 = vmatprep.subr.mxu0 0.0
  %2619 = vmatpush1.msra.mxu0 0.0
  %2620 = vmatprep.subr.mxu0 0.0
  %2621 = vmatpush1.msra.mxu0 0.0
  %2622 = vmatprep.subr.mxu0 0.0
  %2623 = vmatpush1.msra.mxu0 0.0
  %2624 = vmatprep.subr.mxu0 0.0
  %2625 = vmatpush1.msra.mxu0 0.0
  %2626 = vmatprep.subr.mxu0 0.0
  %2627 = vmatpush1.msra.mxu0 0.0
  %2628 = vmatprep.subr.mxu0 0.0
  %2629 = vmatpush1.msra.mxu0 0.0
  %2630 = vmatprep.subr.mxu0 0.0
  %2631 = vmatpush1.msra.mxu0 0.0
  %2632 = vmatprep.subr.mxu0 0.0
  %2633 = vmatpush1.msra.mxu0 0.0
  %2634 = vmatprep.subr.mxu0 0.0
  %2635 = vmatpush1.msra.mxu0 0.0
  %2636 = vmatprep.subr.mxu0 0.0
  %2637 = vmatpush1.msra.mxu0 0.0
  %2638 = vmatprep.subr.mxu0 0.0
  %2639 = vmatpush1.msra.mxu0 0.0
  %2640 = vmatprep.subr.mxu0 0.0
  %2641 = vmatpush1.msra.mxu0 0.0
  %2642 = vmatprep.subr.mxu0 0.0
  %2643 = vmatpush1.msra.mxu0 0.0
  %2644 = vmatprep.subr.mxu0 0.0
  %2645 = vmatpush1.msra.mxu0 0.0
  %2646 = vmatprep.subr.mxu0 0.0
  %2647 = vmatpush1.msra.mxu0 0.0
  %2648 = vmatprep.subr.mxu0 0.0
  %2649 = vmatpush1.msra.mxu0 0.0
  %2650 = vmatprep.subr.mxu0 0.0
  %2651 = vmatpush1.msra.mxu0 0.0
  %2652 = vmatprep.subr.mxu0 0.0
  %2653 = vmatpush1.msra.mxu0 0.0
  %2654 = vmatprep.subr.mxu0 0.0
  %2655 = vmatpush1.msra.mxu0 0.0
  %2656 = vmatprep.subr.mxu0 0.0
  %2657 = vmatpush1.msra.mxu0 0.0
  %2658 = vmatprep.subr.mxu0 0.0
  %2659 = vmatpush1.msra.mxu0 0.0
  %2660 = vmatprep.subr.mxu0 0.0
  %2661 = vmatpush1.msra.mxu0 0.0
  %2662 = vmatprep.subr.mxu0 0.0
  %2663 = vmatpush1.msra.mxu0 0.0
  %2664 = vmatprep.subr.mxu0 0.0
  %2665 = vmatpush1.msra.mxu0 0.0
  %2666 = vmatprep.subr.mxu0 0.0
  %2667 = vmatpush1.msra.mxu0 0.0
  %2668 = vmatprep.subr.mxu0 0.0
  %2669 = vmatpush1.msra.mxu0 0.0
  %2670 = vmatprep.subr.mxu0 0.0
  %2671 = vmatpush1.msra.mxu0 0.0
  %2672 = vmatprep.subr.mxu0 0.0
  %2673 = vmatpush1.msra.mxu0 0.0
  %2674 = vmatprep.subr.mxu0 0.0
  %2675 = vmatpush1.msra.mxu0 0.0
  %2676 = vmatprep.subr.mxu0 0.0
  %2677 = vmatpush1.msra.mxu0 0.0
  %2678 = vmatprep.mubr.f32.mxu0 0.0
  %v2679 = vand.u32 %v915, 4294901760
  %2680 = vmatmul.mubr.f32.gmra.mrb[0].mxu0 %v2679
  %v2681 = vpop.f32.mrb[0].mxu0
  %v2682 = vadd.f32 %v2610, %v2681
  %v2683 = vpop.f32.mrb[0].mxu0
  %2684 = vdwg.mxu0
  %s2685 = scalar_lea.vmem %s3, 4
  %2686 = vst.msk [vmem:[%s2685] sm:$0xf] %vm1367, %v2682
  // Predicated region
  $region14: #{fp_downsamp.1} parent=0 // pred_check
    _
  $region15: #{fp_downsamp.1} parent=0 // pred_check_branch
    %2688 = sbr.rel (0) target = $region17
  $region16: #{fp_downsamp.1} parent=0 // pred_region
    _
  $region17: #{fp_downsamp.1} parent=0 // pred_fallthru
    _
  // Predicated region
  $region18: #{fp_downsamp.1} parent=0 // pred_check
    _
  $region19: #{fp_downsamp.1} parent=0 // pred_check_branch
    %2690 = sbr.rel (0) target = $region21
  $region20: #{fp_downsamp.1} parent=0 // pred_region
    _
  $region21: #{fp_downsamp.1} parent=0 // pred_fallthru
    _

</llo_original>
